<compile_context>
chip_gen: v5e
topology: v5e:2x2
jax: 0.10.0
libtpu: 0.0.40
codegen_flags: <defaults>
</compile_context>

<pallas_src>
import functools

import jax
import jax.numpy as jnp
from jax.experimental import pallas as pl
from jax.experimental.pallas import tpu as pltpu


def _make_kernel(n, cin, cout, kh, kw, width, p, eps):
    """Build the fused conv + batch-stats + BN + ReLU kernel (all sizes static)."""
    inv_count = 1.0 / float(n * p)

    def kernel(x_ref, w_ref, b_ref, g_ref, bt_ref, m_ref, o_ref, sum_sc, sq_sc):
        i = pl.program_id(0)

        @pl.when(i == 0)
        def _init():
            sum_sc[...] = jnp.zeros_like(sum_sc)
            sq_sc[...] = jnp.zeros_like(sq_sc)

        # ---- conv for image i: KH*KW*Cin shifted-row FMAs into a (Cout, P) accumulator ----
        # x_ref is the (Cin, Lf) flattened, height+flat padded image; a static lane slice
        # [s0 : s0 + P] of a row is exactly the tap-(di,dj) shifted input, and the per-dj
        # mask zeroes the positions that wrapped across the (virtual) width padding.
        acc = jnp.zeros((cout, p), dtype=jnp.float32)
        k = 0
        for di in range(kh):
            for dj in range(kw):
                s0 = di * width + dj                    # static flat shift
                mask = m_ref[dj:dj + 1, :]              # (1, P)
                for c in range(cin):
                    xs = x_ref[c:c + 1, s0:s0 + p]      # (1, P) static lane slice
                    acc += w_ref[k] * (xs * mask)       # (Cout,1)*(1,P) -> (Cout,P)
                    k += 1
        y = acc + b_ref[...]                            # conv bias, (Cout, P)

        o_ref[i] = y                                    # lane-dense store of the raw conv out
        sum_sc[...] += jnp.sum(y, axis=1, keepdims=True)
        sq_sc[...] += jnp.sum(y * y, axis=1, keepdims=True)

        # ---- last image: fold batch stats into a per-channel affine, normalize in place ----
        @pl.when(i == pl.num_programs(0) - 1)
        def _finalize():
            mean = sum_sc[...] * inv_count                           # (Cout, 1)
            var = jnp.maximum(sq_sc[...] * inv_count - mean * mean, 0.0)
            inv_std = jax.lax.rsqrt(var + eps)
            scale = g_ref[...] * inv_std                             # (Cout, 1)
            shift = bt_ref[...] - mean * scale                       # (Cout, 1)
            o_ref[...] = jnp.maximum(o_ref[...] * scale + shift, 0.0)

    return kernel


@functools.partial(jax.jit, static_argnames=("pad", "eps"))
def conv_bn_relu(x, weight, bias, gamma, beta, *, pad=1, eps=1e-5):
    n, cin, h, w = x.shape
    cout, cin_w, kh, kw = weight.shape
    assert cin_w == cin
    # The flat-shift conv trick requires "same"-style width padding (stride 1).
    assert 2 * pad == kw - 1, "requires 2*pad == kernel_width - 1 (same padding)"
    ho = h + 2 * pad - kh + 1
    p = ho * w                                  # flattened spatial size per image

    # ---- tiny layout-only glue: pad height physically, width handled via flat shifts ----
    xp = jnp.pad(x.astype(jnp.float32), ((0, 0), (0, 0), (pad, pad), (0, 0)))
    x_flat = jnp.pad(xp.reshape(n, cin, (h + 2 * pad) * w),
                     ((0, 0), (0, 0), (pad, kw - 1 - pad)))
    lf = x_flat.shape[-1]

    # weights (Cout, Cin, KH, KW) -> (KH*KW*Cin, Cout, 1): w_cols[k] is a broadcast-ready column
    w_cols = jnp.transpose(weight, (2, 3, 1, 0)).reshape(kh * kw * cin, cout, 1)
    w_cols = w_cols.astype(jnp.float32)
    b_col = bias.reshape(cout, 1).astype(jnp.float32)
    g_col = gamma.reshape(cout, 1).astype(jnp.float32)
    bt_col = beta.reshape(cout, 1).astype(jnp.float32)

    # per-dj lane masks zeroing the positions that wrap across the virtual width padding
    col = jnp.arange(p, dtype=jnp.int32) % w
    rows = []
    for dj in range(kw):
        lo = max(0, pad - dj)
        hi = w - max(0, dj - pad)
        rows.append(((col >= lo) & (col < hi)).astype(jnp.float32))
    edge_mask = jnp.stack(rows, axis=0)         # (KW, P)

    kernel = _make_kernel(n, cin, cout, kh, kw, w, p, eps)

    out_flat = pl.pallas_call(
        kernel,
        out_shape=jax.ShapeDtypeStruct((n, cout, p), jnp.float32),
        grid_spec=pltpu.PrefetchScalarGridSpec(
            num_scalar_prefetch=0,
            grid=(n,),
            in_specs=[
                pl.BlockSpec((None, cin, lf), lambda i: (i, 0, 0)),            # one image / step
                pl.BlockSpec((kh * kw * cin, cout, 1), lambda i: (0, 0, 0)),   # weights (resident)
                pl.BlockSpec((cout, 1), lambda i: (0, 0)),                     # bias
                pl.BlockSpec((cout, 1), lambda i: (0, 0)),                     # gamma
                pl.BlockSpec((cout, 1), lambda i: (0, 0)),                     # beta
                pl.BlockSpec((kw, p), lambda i: (0, 0)),                       # edge masks
            ],
            # Whole output resident in VMEM across the (sequential) grid; written back once.
            out_specs=pl.BlockSpec((n, cout, p), lambda i: (0, 0, 0)),
            scratch_shapes=[
                pltpu.VMEM((cout, 1), jnp.float32),   # per-channel sum
                pltpu.VMEM((cout, 1), jnp.float32),   # per-channel sum of squares
            ],
        ),
        compiler_params=pltpu.CompilerParams(
            dimension_semantics=("arbitrary",),       # stats + resident output => sequential
            vmem_limit_bytes=32 * 1024 * 1024,        # explicit budget, safe on v5e/v6e/v7x
        ),
    )(x_flat, w_cols, b_col, g_col, bt_col, edge_mask)

    # free reshape back to NCHW
    return out_flat.reshape(n, cout, ho, w)


def _reference(x, weight, bias, gamma, beta, pad=1, eps=1e-5):
    """Pure-JAX reference: Conv2d + train-mode BatchNorm2d (biased var) + ReLU."""
    y = jax.lax.conv_general_dilated(
        x, weight, window_strides=(1, 1), padding=((pad, pad), (pad, pad)),
        dimension_numbers=("NCHW", "OIHW", "NCHW"))
    y = y + bias[None, :, None, None]
    mean = jnp.mean(y, axis=(0, 2, 3), keepdims=True)
    var = jnp.mean((y - mean) ** 2, axis=(0, 2, 3), keepdims=True)
    yhat = (y - mean) * jax.lax.rsqrt(var + eps)
    yhat = yhat * gamma[None, :, None, None] + beta[None, :, None, None]
    return jnp.maximum(yhat, 0.0)


if __name__ == "__main__":
    # Shapes consistent with ConvBNReLU(4, 8, kernel_size=3, padding=1)
    N, CIN, H, W = 2, 4, 16, 16
    COUT, KH, KW, PAD = 8, 3, 3, 1

    key = jax.random.PRNGKey(0)
    kx, kw_, kb, kg, kbt = jax.random.split(key, 5)
    x = jax.random.normal(kx, (N, CIN, H, W), dtype=jnp.float32)
    weight = jax.random.normal(kw_, (COUT, CIN, KH, KW), dtype=jnp.float32) * 0.1
    bias = jax.random.normal(kb, (COUT,), dtype=jnp.float32) * 0.1
    gamma = 1.0 + 0.1 * jax.random.normal(kg, (COUT,), dtype=jnp.float32)
    beta = 0.1 * jax.random.normal(kbt, (COUT,), dtype=jnp.float32)

    out = conv_bn_relu(x, weight, bias, gamma, beta, pad=PAD)
    out = jax.block_until_ready(out)

    ref = _reference(x, weight, bias, gamma, beta, pad=PAD)
    assert out.shape == (N, COUT, H, W), out.shape
    max_err = float(jnp.max(jnp.abs(out - ref)))
    assert max_err < 1e-3, max_err

    print("KERNEL_OK")
</pallas_src>

<mosaic_0001>
module attributes {stable_mosaic.version = 11 : i64} {
  func.func @kernel(%arg0: i32, %arg1: memref<1x4x290xf32, #tpu.memory_space<vmem>>, %arg2: memref<36x8x1xf32, #tpu.memory_space<vmem>>, %arg3: memref<8x1xf32, #tpu.memory_space<vmem>>, %arg4: memref<8x1xf32, #tpu.memory_space<vmem>>, %arg5: memref<8x1xf32, #tpu.memory_space<vmem>>, %arg6: memref<3x256xf32, #tpu.memory_space<vmem>>, %arg7: memref<2x8x256xf32, #tpu.memory_space<vmem>>, %arg8: memref<8x1xf32, #tpu.memory_space<vmem>>, %arg9: memref<8x1xf32, #tpu.memory_space<vmem>>) attributes {dimension_semantics = [#tpu.dimension_semantics<arbitrary>], iteration_bounds = array<i64: 2>, scalar_prefetch = 0 : i64, scratch_operands = 2 : i64, tpu.core_type = #tpu.core_type<tc>, window_params = [{transform_indices = @transform_0, window_bounds = array<i64: 1, 4, 290>}, {pipeline_mode = #tpu.pipeline_mode<synchronous>, transform_indices = @transform_1, window_bounds = array<i64: 36, 8, 1>}, {pipeline_mode = #tpu.pipeline_mode<synchronous>, transform_indices = @transform_2, window_bounds = array<i64: 8, 1>}, {pipeline_mode = #tpu.pipeline_mode<synchronous>, transform_indices = @transform_3, window_bounds = array<i64: 8, 1>}, {pipeline_mode = #tpu.pipeline_mode<synchronous>, transform_indices = @transform_4, window_bounds = array<i64: 8, 1>}, {pipeline_mode = #tpu.pipeline_mode<synchronous>, transform_indices = @transform_5, window_bounds = array<i64: 3, 256>}, {pipeline_mode = #tpu.pipeline_mode<synchronous>, transform_indices = @transform_6, window_bounds = array<i64: 2, 8, 256>}]} {
    %c0_i32 = arith.constant 0 : i32
    %0 = arith.cmpi eq, %arg0, %c0_i32 : i32
    %1 = arith.extui %0 : i1 to i32
    %c0_i32_0 = arith.constant 0 : i32
    %2 = arith.cmpi ne, %1, %c0_i32_0 : i32
    scf.if %2 {
      %cst_214 = arith.constant 0.000000e+00 : f32
      %358 = vector.broadcast %cst_214 : f32 to vector<8x1xf32>
      %c0_215 = arith.constant 0 : index
      %c0_216 = arith.constant 0 : index
      %359 = vector.load %arg8[%c0_215, %c0_216] : memref<8x1xf32, #tpu.memory_space<vmem>>, vector<8x1xf32>
      tpu.vector_store %arg8[%c0_215, %c0_216], %358 {strides = array<i32>} : memref<8x1xf32, #tpu.memory_space<vmem>>, vector<8x1xf32>,
      %cst_217 = arith.constant 0.000000e+00 : f32
      %360 = vector.broadcast %cst_217 : f32 to vector<8x1xf32>
      %c0_218 = arith.constant 0 : index
      %c0_219 = arith.constant 0 : index
      %361 = vector.load %arg9[%c0_218, %c0_219] : memref<8x1xf32, #tpu.memory_space<vmem>>, vector<8x1xf32>
      tpu.vector_store %arg9[%c0_218, %c0_219], %360 {strides = array<i32>} : memref<8x1xf32, #tpu.memory_space<vmem>>, vector<8x1xf32>,
    } else {
    }
    %cst = arith.constant 0.000000e+00 : f32
    %3 = vector.broadcast %cst : f32 to vector<8x256xf32>
    %c0 = arith.constant 0 : index
    %c0_1 = arith.constant 0 : index
    %4 = vector.load %arg6[%c0, %c0_1] : memref<3x256xf32, #tpu.memory_space<vmem>>, vector<1x256xf32>
    %c0_2 = arith.constant 0 : index
    %c0_3 = arith.constant 0 : index
    %c0_4 = arith.constant 0 : index
    %5 = vector.load %arg1[%c0_2, %c0_3, %c0_4] : memref<1x4x290xf32, #tpu.memory_space<vmem>>, vector<1x1x256xf32>
    %6 = vector.shape_cast %5 : vector<1x1x256xf32> to vector<1x256xf32>
    %c0_5 = arith.constant 0 : index
    %c0_6 = arith.constant 0 : index
    %c0_7 = arith.constant 0 : index
    %7 = vector.load %arg2[%c0_5, %c0_6, %c0_7] : memref<36x8x1xf32, #tpu.memory_space<vmem>>, vector<1x8x1xf32>
    %8 = vector.shape_cast %7 : vector<1x8x1xf32> to vector<8x1xf32>
    %9 = arith.mulf %6, %4 : vector<1x256xf32>
    %10 = vector.broadcast %8 : vector<8x1xf32> to vector<8x256xf32>
    %11 = vector.broadcast %9 : vector<1x256xf32> to vector<8x256xf32>
    %12 = arith.mulf %10, %11 : vector<8x256xf32>
    %13 = arith.addf %3, %12 : vector<8x256xf32>
    %c0_8 = arith.constant 0 : index
    %c1 = arith.constant 1 : index
    %c0_9 = arith.constant 0 : index
    %14 = vector.load %arg1[%c0_8, %c1, %c0_9] : memref<1x4x290xf32, #tpu.memory_space<vmem>>, vector<1x1x256xf32>
    %15 = vector.shape_cast %14 : vector<1x1x256xf32> to vector<1x256xf32>
    %c1_10 = arith.constant 1 : index
    %c0_11 = arith.constant 0 : index
    %c0_12 = arith.constant 0 : index
    %16 = vector.load %arg2[%c1_10, %c0_11, %c0_12] : memref<36x8x1xf32, #tpu.memory_space<vmem>>, vector<1x8x1xf32>
    %17 = vector.shape_cast %16 : vector<1x8x1xf32> to vector<8x1xf32>
    %18 = arith.mulf %15, %4 : vector<1x256xf32>
    %19 = vector.broadcast %17 : vector<8x1xf32> to vector<8x256xf32>
    %20 = vector.broadcast %18 : vector<1x256xf32> to vector<8x256xf32>
    %21 = arith.mulf %19, %20 : vector<8x256xf32>
    %22 = arith.addf %13, %21 : vector<8x256xf32>
    %c0_13 = arith.constant 0 : index
    %c2 = arith.constant 2 : index
    %c0_14 = arith.constant 0 : index
    %23 = vector.load %arg1[%c0_13, %c2, %c0_14] : memref<1x4x290xf32, #tpu.memory_space<vmem>>, vector<1x1x256xf32>
    %24 = vector.shape_cast %23 : vector<1x1x256xf32> to vector<1x256xf32>
    %c2_15 = arith.constant 2 : index
    %c0_16 = arith.constant 0 : index
    %c0_17 = arith.constant 0 : index
    %25 = vector.load %arg2[%c2_15, %c0_16, %c0_17] : memref<36x8x1xf32, #tpu.memory_space<vmem>>, vector<1x8x1xf32>
    %26 = vector.shape_cast %25 : vector<1x8x1xf32> to vector<8x1xf32>
    %27 = arith.mulf %24, %4 : vector<1x256xf32>
    %28 = vector.broadcast %26 : vector<8x1xf32> to vector<8x256xf32>
    %29 = vector.broadcast %27 : vector<1x256xf32> to vector<8x256xf32>
    %30 = arith.mulf %28, %29 : vector<8x256xf32>
    %31 = arith.addf %22, %30 : vector<8x256xf32>
    %c0_18 = arith.constant 0 : index
    %c3 = arith.constant 3 : index
    %c0_19 = arith.constant 0 : index
    %32 = vector.load %arg1[%c0_18, %c3, %c0_19] : memref<1x4x290xf32, #tpu.memory_space<vmem>>, vector<1x1x256xf32>
    %33 = vector.shape_cast %32 : vector<1x1x256xf32> to vector<1x256xf32>
    %c3_20 = arith.constant 3 : index
    %c0_21 = arith.constant 0 : index
    %c0_22 = arith.constant 0 : index
    %34 = vector.load %arg2[%c3_20, %c0_21, %c0_22] : memref<36x8x1xf32, #tpu.memory_space<vmem>>, vector<1x8x1xf32>
    %35 = vector.shape_cast %34 : vector<1x8x1xf32> to vector<8x1xf32>
    %36 = arith.mulf %33, %4 : vector<1x256xf32>
    %37 = vector.broadcast %35 : vector<8x1xf32> to vector<8x256xf32>
    %38 = vector.broadcast %36 : vector<1x256xf32> to vector<8x256xf32>
    %39 = arith.mulf %37, %38 : vector<8x256xf32>
    %40 = arith.addf %31, %39 : vector<8x256xf32>
    %c1_23 = arith.constant 1 : index
    %c0_24 = arith.constant 0 : index
    %41 = vector.load %arg6[%c1_23, %c0_24] : memref<3x256xf32, #tpu.memory_space<vmem>>, vector<1x256xf32>
    %c0_25 = arith.constant 0 : index
    %c0_26 = arith.constant 0 : index
    %c1_27 = arith.constant 1 : index
    %42 = vector.load %arg1[%c0_25, %c0_26, %c1_27] : memref<1x4x290xf32, #tpu.memory_space<vmem>>, vector<1x1x256xf32>
    %43 = vector.shape_cast %42 : vector<1x1x256xf32> to vector<1x256xf32>
    %c4 = arith.constant 4 : index
    %c0_28 = arith.constant 0 : index
    %c0_29 = arith.constant 0 : index
    %44 = vector.load %arg2[%c4, %c0_28, %c0_29] : memref<36x8x1xf32, #tpu.memory_space<vmem>>, vector<1x8x1xf32>
    %45 = vector.shape_cast %44 : vector<1x8x1xf32> to vector<8x1xf32>
    %46 = arith.mulf %43, %41 : vector<1x256xf32>
    %47 = vector.broadcast %45 : vector<8x1xf32> to vector<8x256xf32>
    %48 = vector.broadcast %46 : vector<1x256xf32> to vector<8x256xf32>
    %49 = arith.mulf %47, %48 : vector<8x256xf32>
    %50 = arith.addf %40, %49 : vector<8x256xf32>
    %c0_30 = arith.constant 0 : index
    %c1_31 = arith.constant 1 : index
    %c1_32 = arith.constant 1 : index
    %51 = vector.load %arg1[%c0_30, %c1_31, %c1_32] : memref<1x4x290xf32, #tpu.memory_space<vmem>>, vector<1x1x256xf32>
    %52 = vector.shape_cast %51 : vector<1x1x256xf32> to vector<1x256xf32>
    %c5 = arith.constant 5 : index
    %c0_33 = arith.constant 0 : index
    %c0_34 = arith.constant 0 : index
    %53 = vector.load %arg2[%c5, %c0_33, %c0_34] : memref<36x8x1xf32, #tpu.memory_space<vmem>>, vector<1x8x1xf32>
    %54 = vector.shape_cast %53 : vector<1x8x1xf32> to vector<8x1xf32>
    %55 = arith.mulf %52, %41 : vector<1x256xf32>
    %56 = vector.broadcast %54 : vector<8x1xf32> to vector<8x256xf32>
    %57 = vector.broadcast %55 : vector<1x256xf32> to vector<8x256xf32>
    %58 = arith.mulf %56, %57 : vector<8x256xf32>
    %59 = arith.addf %50, %58 : vector<8x256xf32>
    %c0_35 = arith.constant 0 : index
    %c2_36 = arith.constant 2 : index
    %c1_37 = arith.constant 1 : index
    %60 = vector.load %arg1[%c0_35, %c2_36, %c1_37] : memref<1x4x290xf32, #tpu.memory_space<vmem>>, vector<1x1x256xf32>
    %61 = vector.shape_cast %60 : vector<1x1x256xf32> to vector<1x256xf32>
    %c6 = arith.constant 6 : index
    %c0_38 = arith.constant 0 : index
    %c0_39 = arith.constant 0 : index
    %62 = vector.load %arg2[%c6, %c0_38, %c0_39] : memref<36x8x1xf32, #tpu.memory_space<vmem>>, vector<1x8x1xf32>
    %63 = vector.shape_cast %62 : vector<1x8x1xf32> to vector<8x1xf32>
    %64 = arith.mulf %61, %41 : vector<1x256xf32>
    %65 = vector.broadcast %63 : vector<8x1xf32> to vector<8x256xf32>
    %66 = vector.broadcast %64 : vector<1x256xf32> to vector<8x256xf32>
    %67 = arith.mulf %65, %66 : vector<8x256xf32>
    %68 = arith.addf %59, %67 : vector<8x256xf32>
    %c0_40 = arith.constant 0 : index
    %c3_41 = arith.constant 3 : index
    %c1_42 = arith.constant 1 : index
    %69 = vector.load %arg1[%c0_40, %c3_41, %c1_42] : memref<1x4x290xf32, #tpu.memory_space<vmem>>, vector<1x1x256xf32>
    %70 = vector.shape_cast %69 : vector<1x1x256xf32> to vector<1x256xf32>
    %c7 = arith.constant 7 : index
    %c0_43 = arith.constant 0 : index
    %c0_44 = arith.constant 0 : index
    %71 = vector.load %arg2[%c7, %c0_43, %c0_44] : memref<36x8x1xf32, #tpu.memory_space<vmem>>, vector<1x8x1xf32>
    %72 = vector.shape_cast %71 : vector<1x8x1xf32> to vector<8x1xf32>
    %73 = arith.mulf %70, %41 : vector<1x256xf32>
    %74 = vector.broadcast %72 : vector<8x1xf32> to vector<8x256xf32>
    %75 = vector.broadcast %73 : vector<1x256xf32> to vector<8x256xf32>
    %76 = arith.mulf %74, %75 : vector<8x256xf32>
    %77 = arith.addf %68, %76 : vector<8x256xf32>
    %c2_45 = arith.constant 2 : index
    %c0_46 = arith.constant 0 : index
    %78 = vector.load %arg6[%c2_45, %c0_46] : memref<3x256xf32, #tpu.memory_space<vmem>>, vector<1x256xf32>
    %c0_47 = arith.constant 0 : index
    %c0_48 = arith.constant 0 : index
    %c2_49 = arith.constant 2 : index
    %79 = vector.load %arg1[%c0_47, %c0_48, %c2_49] : memref<1x4x290xf32, #tpu.memory_space<vmem>>, vector<1x1x256xf32>
    %80 = vector.shape_cast %79 : vector<1x1x256xf32> to vector<1x256xf32>
    %c8 = arith.constant 8 : index
    %c0_50 = arith.constant 0 : index
    %c0_51 = arith.constant 0 : index
    %81 = vector.load %arg2[%c8, %c0_50, %c0_51] : memref<36x8x1xf32, #tpu.memory_space<vmem>>, vector<1x8x1xf32>
    %82 = vector.shape_cast %81 : vector<1x8x1xf32> to vector<8x1xf32>
    %83 = arith.mulf %80, %78 : vector<1x256xf32>
    %84 = vector.broadcast %82 : vector<8x1xf32> to vector<8x256xf32>
    %85 = vector.broadcast %83 : vector<1x256xf32> to vector<8x256xf32>
    %86 = arith.mulf %84, %85 : vector<8x256xf32>
    %87 = arith.addf %77, %86 : vector<8x256xf32>
    %c0_52 = arith.constant 0 : index
    %c1_53 = arith.constant 1 : index
    %c2_54 = arith.constant 2 : index
    %88 = vector.load %arg1[%c0_52, %c1_53, %c2_54] : memref<1x4x290xf32, #tpu.memory_space<vmem>>, vector<1x1x256xf32>
    %89 = vector.shape_cast %88 : vector<1x1x256xf32> to vector<1x256xf32>
    %c9 = arith.constant 9 : index
    %c0_55 = arith.constant 0 : index
    %c0_56 = arith.constant 0 : index
    %90 = vector.load %arg2[%c9, %c0_55, %c0_56] : memref<36x8x1xf32, #tpu.memory_space<vmem>>, vector<1x8x1xf32>
    %91 = vector.shape_cast %90 : vector<1x8x1xf32> to vector<8x1xf32>
    %92 = arith.mulf %89, %78 : vector<1x256xf32>
    %93 = vector.broadcast %91 : vector<8x1xf32> to vector<8x256xf32>
    %94 = vector.broadcast %92 : vector<1x256xf32> to vector<8x256xf32>
    %95 = arith.mulf %93, %94 : vector<8x256xf32>
    %96 = arith.addf %87, %95 : vector<8x256xf32>
    %c0_57 = arith.constant 0 : index
    %c2_58 = arith.constant 2 : index
    %c2_59 = arith.constant 2 : index
    %97 = vector.load %arg1[%c0_57, %c2_58, %c2_59] : memref<1x4x290xf32, #tpu.memory_space<vmem>>, vector<1x1x256xf32>
    %98 = vector.shape_cast %97 : vector<1x1x256xf32> to vector<1x256xf32>
    %c10 = arith.constant 10 : index
    %c0_60 = arith.constant 0 : index
    %c0_61 = arith.constant 0 : index
    %99 = vector.load %arg2[%c10, %c0_60, %c0_61] : memref<36x8x1xf32, #tpu.memory_space<vmem>>, vector<1x8x1xf32>
    %100 = vector.shape_cast %99 : vector<1x8x1xf32> to vector<8x1xf32>
    %101 = arith.mulf %98, %78 : vector<1x256xf32>
    %102 = vector.broadcast %100 : vector<8x1xf32> to vector<8x256xf32>
    %103 = vector.broadcast %101 : vector<1x256xf32> to vector<8x256xf32>
    %104 = arith.mulf %102, %103 : vector<8x256xf32>
    %105 = arith.addf %96, %104 : vector<8x256xf32>
    %c0_62 = arith.constant 0 : index
    %c3_63 = arith.constant 3 : index
    %c2_64 = arith.constant 2 : index
    %106 = vector.load %arg1[%c0_62, %c3_63, %c2_64] : memref<1x4x290xf32, #tpu.memory_space<vmem>>, vector<1x1x256xf32>
    %107 = vector.shape_cast %106 : vector<1x1x256xf32> to vector<1x256xf32>
    %c11 = arith.constant 11 : index
    %c0_65 = arith.constant 0 : index
    %c0_66 = arith.constant 0 : index
    %108 = vector.load %arg2[%c11, %c0_65, %c0_66] : memref<36x8x1xf32, #tpu.memory_space<vmem>>, vector<1x8x1xf32>
    %109 = vector.shape_cast %108 : vector<1x8x1xf32> to vector<8x1xf32>
    %110 = arith.mulf %107, %78 : vector<1x256xf32>
    %111 = vector.broadcast %109 : vector<8x1xf32> to vector<8x256xf32>
    %112 = vector.broadcast %110 : vector<1x256xf32> to vector<8x256xf32>
    %113 = arith.mulf %111, %112 : vector<8x256xf32>
    %114 = arith.addf %105, %113 : vector<8x256xf32>
    %c0_67 = arith.constant 0 : index
    %c0_68 = arith.constant 0 : index
    %115 = vector.load %arg6[%c0_67, %c0_68] : memref<3x256xf32, #tpu.memory_space<vmem>>, vector<1x256xf32>
    %c0_69 = arith.constant 0 : index
    %c0_70 = arith.constant 0 : index
    %c16 = arith.constant 16 : index
    %116 = vector.load %arg1[%c0_69, %c0_70, %c16] : memref<1x4x290xf32, #tpu.memory_space<vmem>>, vector<1x1x256xf32>
    %117 = vector.shape_cast %116 : vector<1x1x256xf32> to vector<1x256xf32>
    %c12 = arith.constant 12 : index
    %c0_71 = arith.constant 0 : index
    %c0_72 = arith.constant 0 : index
    %118 = vector.load %arg2[%c12, %c0_71, %c0_72] : memref<36x8x1xf32, #tpu.memory_space<vmem>>, vector<1x8x1xf32>
    %119 = vector.shape_cast %118 : vector<1x8x1xf32> to vector<8x1xf32>
    %120 = arith.mulf %117, %115 : vector<1x256xf32>
    %121 = vector.broadcast %119 : vector<8x1xf32> to vector<8x256xf32>
    %122 = vector.broadcast %120 : vector<1x256xf32> to vector<8x256xf32>
    %123 = arith.mulf %121, %122 : vector<8x256xf32>
    %124 = arith.addf %114, %123 : vector<8x256xf32>
    %c0_73 = arith.constant 0 : index
    %c1_74 = arith.constant 1 : index
    %c16_75 = arith.constant 16 : index
    %125 = vector.load %arg1[%c0_73, %c1_74, %c16_75] : memref<1x4x290xf32, #tpu.memory_space<vmem>>, vector<1x1x256xf32>
    %126 = vector.shape_cast %125 : vector<1x1x256xf32> to vector<1x256xf32>
    %c13 = arith.constant 13 : index
    %c0_76 = arith.constant 0 : index
    %c0_77 = arith.constant 0 : index
    %127 = vector.load %arg2[%c13, %c0_76, %c0_77] : memref<36x8x1xf32, #tpu.memory_space<vmem>>, vector<1x8x1xf32>
    %128 = vector.shape_cast %127 : vector<1x8x1xf32> to vector<8x1xf32>
    %129 = arith.mulf %126, %115 : vector<1x256xf32>
    %130 = vector.broadcast %128 : vector<8x1xf32> to vector<8x256xf32>
    %131 = vector.broadcast %129 : vector<1x256xf32> to vector<8x256xf32>
    %132 = arith.mulf %130, %131 : vector<8x256xf32>
    %133 = arith.addf %124, %132 : vector<8x256xf32>
    %c0_78 = arith.constant 0 : index
    %c2_79 = arith.constant 2 : index
    %c16_80 = arith.constant 16 : index
    %134 = vector.load %arg1[%c0_78, %c2_79, %c16_80] : memref<1x4x290xf32, #tpu.memory_space<vmem>>, vector<1x1x256xf32>
    %135 = vector.shape_cast %134 : vector<1x1x256xf32> to vector<1x256xf32>
    %c14 = arith.constant 14 : index
    %c0_81 = arith.constant 0 : index
    %c0_82 = arith.constant 0 : index
    %136 = vector.load %arg2[%c14, %c0_81, %c0_82] : memref<36x8x1xf32, #tpu.memory_space<vmem>>, vector<1x8x1xf32>
    %137 = vector.shape_cast %136 : vector<1x8x1xf32> to vector<8x1xf32>
    %138 = arith.mulf %135, %115 : vector<1x256xf32>
    %139 = vector.broadcast %137 : vector<8x1xf32> to vector<8x256xf32>
    %140 = vector.broadcast %138 : vector<1x256xf32> to vector<8x256xf32>
    %141 = arith.mulf %139, %140 : vector<8x256xf32>
    %142 = arith.addf %133, %141 : vector<8x256xf32>
    %c0_83 = arith.constant 0 : index
    %c3_84 = arith.constant 3 : index
    %c16_85 = arith.constant 16 : index
    %143 = vector.load %arg1[%c0_83, %c3_84, %c16_85] : memref<1x4x290xf32, #tpu.memory_space<vmem>>, vector<1x1x256xf32>
    %144 = vector.shape_cast %143 : vector<1x1x256xf32> to vector<1x256xf32>
    %c15 = arith.constant 15 : index
    %c0_86 = arith.constant 0 : index
    %c0_87 = arith.constant 0 : index
    %145 = vector.load %arg2[%c15, %c0_86, %c0_87] : memref<36x8x1xf32, #tpu.memory_space<vmem>>, vector<1x8x1xf32>
    %146 = vector.shape_cast %145 : vector<1x8x1xf32> to vector<8x1xf32>
    %147 = arith.mulf %144, %115 : vector<1x256xf32>
    %148 = vector.broadcast %146 : vector<8x1xf32> to vector<8x256xf32>
    %149 = vector.broadcast %147 : vector<1x256xf32> to vector<8x256xf32>
    %150 = arith.mulf %148, %149 : vector<8x256xf32>
    %151 = arith.addf %142, %150 : vector<8x256xf32>
    %c1_88 = arith.constant 1 : index
    %c0_89 = arith.constant 0 : index
    %152 = vector.load %arg6[%c1_88, %c0_89] : memref<3x256xf32, #tpu.memory_space<vmem>>, vector<1x256xf32>
    %c0_90 = arith.constant 0 : index
    %c0_91 = arith.constant 0 : index
    %c17 = arith.constant 17 : index
    %153 = vector.load %arg1[%c0_90, %c0_91, %c17] : memref<1x4x290xf32, #tpu.memory_space<vmem>>, vector<1x1x256xf32>
    %154 = vector.shape_cast %153 : vector<1x1x256xf32> to vector<1x256xf32>
    %c16_92 = arith.constant 16 : index
    %c0_93 = arith.constant 0 : index
    %c0_94 = arith.constant 0 : index
    %155 = vector.load %arg2[%c16_92, %c0_93, %c0_94] : memref<36x8x1xf32, #tpu.memory_space<vmem>>, vector<1x8x1xf32>
    %156 = vector.shape_cast %155 : vector<1x8x1xf32> to vector<8x1xf32>
    %157 = arith.mulf %154, %152 : vector<1x256xf32>
    %158 = vector.broadcast %156 : vector<8x1xf32> to vector<8x256xf32>
    %159 = vector.broadcast %157 : vector<1x256xf32> to vector<8x256xf32>
    %160 = arith.mulf %158, %159 : vector<8x256xf32>
    %161 = arith.addf %151, %160 : vector<8x256xf32>
    %c0_95 = arith.constant 0 : index
    %c1_96 = arith.constant 1 : index
    %c17_97 = arith.constant 17 : index
    %162 = vector.load %arg1[%c0_95, %c1_96, %c17_97] : memref<1x4x290xf32, #tpu.memory_space<vmem>>, vector<1x1x256xf32>
    %163 = vector.shape_cast %162 : vector<1x1x256xf32> to vector<1x256xf32>
    %c17_98 = arith.constant 17 : index
    %c0_99 = arith.constant 0 : index
    %c0_100 = arith.constant 0 : index
    %164 = vector.load %arg2[%c17_98, %c0_99, %c0_100] : memref<36x8x1xf32, #tpu.memory_space<vmem>>, vector<1x8x1xf32>
    %165 = vector.shape_cast %164 : vector<1x8x1xf32> to vector<8x1xf32>
    %166 = arith.mulf %163, %152 : vector<1x256xf32>
    %167 = vector.broadcast %165 : vector<8x1xf32> to vector<8x256xf32>
    %168 = vector.broadcast %166 : vector<1x256xf32> to vector<8x256xf32>
    %169 = arith.mulf %167, %168 : vector<8x256xf32>
    %170 = arith.addf %161, %169 : vector<8x256xf32>
    %c0_101 = arith.constant 0 : index
    %c2_102 = arith.constant 2 : index
    %c17_103 = arith.constant 17 : index
    %171 = vector.load %arg1[%c0_101, %c2_102, %c17_103] : memref<1x4x290xf32, #tpu.memory_space<vmem>>, vector<1x1x256xf32>
    %172 = vector.shape_cast %171 : vector<1x1x256xf32> to vector<1x256xf32>
    %c18 = arith.constant 18 : index
    %c0_104 = arith.constant 0 : index
    %c0_105 = arith.constant 0 : index
    %173 = vector.load %arg2[%c18, %c0_104, %c0_105] : memref<36x8x1xf32, #tpu.memory_space<vmem>>, vector<1x8x1xf32>
    %174 = vector.shape_cast %173 : vector<1x8x1xf32> to vector<8x1xf32>
    %175 = arith.mulf %172, %152 : vector<1x256xf32>
    %176 = vector.broadcast %174 : vector<8x1xf32> to vector<8x256xf32>
    %177 = vector.broadcast %175 : vector<1x256xf32> to vector<8x256xf32>
    %178 = arith.mulf %176, %177 : vector<8x256xf32>
    %179 = arith.addf %170, %178 : vector<8x256xf32>
    %c0_106 = arith.constant 0 : index
    %c3_107 = arith.constant 3 : index
    %c17_108 = arith.constant 17 : index
    %180 = vector.load %arg1[%c0_106, %c3_107, %c17_108] : memref<1x4x290xf32, #tpu.memory_space<vmem>>, vector<1x1x256xf32>
    %181 = vector.shape_cast %180 : vector<1x1x256xf32> to vector<1x256xf32>
    %c19 = arith.constant 19 : index
    %c0_109 = arith.constant 0 : index
    %c0_110 = arith.constant 0 : index
    %182 = vector.load %arg2[%c19, %c0_109, %c0_110] : memref<36x8x1xf32, #tpu.memory_space<vmem>>, vector<1x8x1xf32>
    %183 = vector.shape_cast %182 : vector<1x8x1xf32> to vector<8x1xf32>
    %184 = arith.mulf %181, %152 : vector<1x256xf32>
    %185 = vector.broadcast %183 : vector<8x1xf32> to vector<8x256xf32>
    %186 = vector.broadcast %184 : vector<1x256xf32> to vector<8x256xf32>
    %187 = arith.mulf %185, %186 : vector<8x256xf32>
    %188 = arith.addf %179, %187 : vector<8x256xf32>
    %c2_111 = arith.constant 2 : index
    %c0_112 = arith.constant 0 : index
    %189 = vector.load %arg6[%c2_111, %c0_112] : memref<3x256xf32, #tpu.memory_space<vmem>>, vector<1x256xf32>
    %c0_113 = arith.constant 0 : index
    %c0_114 = arith.constant 0 : index
    %c18_115 = arith.constant 18 : index
    %190 = vector.load %arg1[%c0_113, %c0_114, %c18_115] : memref<1x4x290xf32, #tpu.memory_space<vmem>>, vector<1x1x256xf32>
    %191 = vector.shape_cast %190 : vector<1x1x256xf32> to vector<1x256xf32>
    %c20 = arith.constant 20 : index
    %c0_116 = arith.constant 0 : index
    %c0_117 = arith.constant 0 : index
    %192 = vector.load %arg2[%c20, %c0_116, %c0_117] : memref<36x8x1xf32, #tpu.memory_space<vmem>>, vector<1x8x1xf32>
    %193 = vector.shape_cast %192 : vector<1x8x1xf32> to vector<8x1xf32>
    %194 = arith.mulf %191, %189 : vector<1x256xf32>
    %195 = vector.broadcast %193 : vector<8x1xf32> to vector<8x256xf32>
    %196 = vector.broadcast %194 : vector<1x256xf32> to vector<8x256xf32>
    %197 = arith.mulf %195, %196 : vector<8x256xf32>
    %198 = arith.addf %188, %197 : vector<8x256xf32>
    %c0_118 = arith.constant 0 : index
    %c1_119 = arith.constant 1 : index
    %c18_120 = arith.constant 18 : index
    %199 = vector.load %arg1[%c0_118, %c1_119, %c18_120] : memref<1x4x290xf32, #tpu.memory_space<vmem>>, vector<1x1x256xf32>
    %200 = vector.shape_cast %199 : vector<1x1x256xf32> to vector<1x256xf32>
    %c21 = arith.constant 21 : index
    %c0_121 = arith.constant 0 : index
    %c0_122 = arith.constant 0 : index
    %201 = vector.load %arg2[%c21, %c0_121, %c0_122] : memref<36x8x1xf32, #tpu.memory_space<vmem>>, vector<1x8x1xf32>
    %202 = vector.shape_cast %201 : vector<1x8x1xf32> to vector<8x1xf32>
    %203 = arith.mulf %200, %189 : vector<1x256xf32>
    %204 = vector.broadcast %202 : vector<8x1xf32> to vector<8x256xf32>
    %205 = vector.broadcast %203 : vector<1x256xf32> to vector<8x256xf32>
    %206 = arith.mulf %204, %205 : vector<8x256xf32>
    %207 = arith.addf %198, %206 : vector<8x256xf32>
    %c0_123 = arith.constant 0 : index
    %c2_124 = arith.constant 2 : index
    %c18_125 = arith.constant 18 : index
    %208 = vector.load %arg1[%c0_123, %c2_124, %c18_125] : memref<1x4x290xf32, #tpu.memory_space<vmem>>, vector<1x1x256xf32>
    %209 = vector.shape_cast %208 : vector<1x1x256xf32> to vector<1x256xf32>
    %c22 = arith.constant 22 : index
    %c0_126 = arith.constant 0 : index
    %c0_127 = arith.constant 0 : index
    %210 = vector.load %arg2[%c22, %c0_126, %c0_127] : memref<36x8x1xf32, #tpu.memory_space<vmem>>, vector<1x8x1xf32>
    %211 = vector.shape_cast %210 : vector<1x8x1xf32> to vector<8x1xf32>
    %212 = arith.mulf %209, %189 : vector<1x256xf32>
    %213 = vector.broadcast %211 : vector<8x1xf32> to vector<8x256xf32>
    %214 = vector.broadcast %212 : vector<1x256xf32> to vector<8x256xf32>
    %215 = arith.mulf %213, %214 : vector<8x256xf32>
    %216 = arith.addf %207, %215 : vector<8x256xf32>
    %c0_128 = arith.constant 0 : index
    %c3_129 = arith.constant 3 : index
    %c18_130 = arith.constant 18 : index
    %217 = vector.load %arg1[%c0_128, %c3_129, %c18_130] : memref<1x4x290xf32, #tpu.memory_space<vmem>>, vector<1x1x256xf32>
    %218 = vector.shape_cast %217 : vector<1x1x256xf32> to vector<1x256xf32>
    %c23 = arith.constant 23 : index
    %c0_131 = arith.constant 0 : index
    %c0_132 = arith.constant 0 : index
    %219 = vector.load %arg2[%c23, %c0_131, %c0_132] : memref<36x8x1xf32, #tpu.memory_space<vmem>>, vector<1x8x1xf32>
    %220 = vector.shape_cast %219 : vector<1x8x1xf32> to vector<8x1xf32>
    %221 = arith.mulf %218, %189 : vector<1x256xf32>
    %222 = vector.broadcast %220 : vector<8x1xf32> to vector<8x256xf32>
    %223 = vector.broadcast %221 : vector<1x256xf32> to vector<8x256xf32>
    %224 = arith.mulf %222, %223 : vector<8x256xf32>
    %225 = arith.addf %216, %224 : vector<8x256xf32>
    %c0_133 = arith.constant 0 : index
    %c0_134 = arith.constant 0 : index
    %226 = vector.load %arg6[%c0_133, %c0_134] : memref<3x256xf32, #tpu.memory_space<vmem>>, vector<1x256xf32>
    %c0_135 = arith.constant 0 : index
    %c0_136 = arith.constant 0 : index
    %c32 = arith.constant 32 : index
    %227 = vector.load %arg1[%c0_135, %c0_136, %c32] : memref<1x4x290xf32, #tpu.memory_space<vmem>>, vector<1x1x256xf32>
    %228 = vector.shape_cast %227 : vector<1x1x256xf32> to vector<1x256xf32>
    %c24 = arith.constant 24 : index
    %c0_137 = arith.constant 0 : index
    %c0_138 = arith.constant 0 : index
    %229 = vector.load %arg2[%c24, %c0_137, %c0_138] : memref<36x8x1xf32, #tpu.memory_space<vmem>>, vector<1x8x1xf32>
    %230 = vector.shape_cast %229 : vector<1x8x1xf32> to vector<8x1xf32>
    %231 = arith.mulf %228, %226 : vector<1x256xf32>
    %232 = vector.broadcast %230 : vector<8x1xf32> to vector<8x256xf32>
    %233 = vector.broadcast %231 : vector<1x256xf32> to vector<8x256xf32>
    %234 = arith.mulf %232, %233 : vector<8x256xf32>
    %235 = arith.addf %225, %234 : vector<8x256xf32>
    %c0_139 = arith.constant 0 : index
    %c1_140 = arith.constant 1 : index
    %c32_141 = arith.constant 32 : index
    %236 = vector.load %arg1[%c0_139, %c1_140, %c32_141] : memref<1x4x290xf32, #tpu.memory_space<vmem>>, vector<1x1x256xf32>
    %237 = vector.shape_cast %236 : vector<1x1x256xf32> to vector<1x256xf32>
    %c25 = arith.constant 25 : index
    %c0_142 = arith.constant 0 : index
    %c0_143 = arith.constant 0 : index
    %238 = vector.load %arg2[%c25, %c0_142, %c0_143] : memref<36x8x1xf32, #tpu.memory_space<vmem>>, vector<1x8x1xf32>
    %239 = vector.shape_cast %238 : vector<1x8x1xf32> to vector<8x1xf32>
    %240 = arith.mulf %237, %226 : vector<1x256xf32>
    %241 = vector.broadcast %239 : vector<8x1xf32> to vector<8x256xf32>
    %242 = vector.broadcast %240 : vector<1x256xf32> to vector<8x256xf32>
    %243 = arith.mulf %241, %242 : vector<8x256xf32>
    %244 = arith.addf %235, %243 : vector<8x256xf32>
    %c0_144 = arith.constant 0 : index
    %c2_145 = arith.constant 2 : index
    %c32_146 = arith.constant 32 : index
    %245 = vector.load %arg1[%c0_144, %c2_145, %c32_146] : memref<1x4x290xf32, #tpu.memory_space<vmem>>, vector<1x1x256xf32>
    %246 = vector.shape_cast %245 : vector<1x1x256xf32> to vector<1x256xf32>
    %c26 = arith.constant 26 : index
    %c0_147 = arith.constant 0 : index
    %c0_148 = arith.constant 0 : index
    %247 = vector.load %arg2[%c26, %c0_147, %c0_148] : memref<36x8x1xf32, #tpu.memory_space<vmem>>, vector<1x8x1xf32>
    %248 = vector.shape_cast %247 : vector<1x8x1xf32> to vector<8x1xf32>
    %249 = arith.mulf %246, %226 : vector<1x256xf32>
    %250 = vector.broadcast %248 : vector<8x1xf32> to vector<8x256xf32>
    %251 = vector.broadcast %249 : vector<1x256xf32> to vector<8x256xf32>
    %252 = arith.mulf %250, %251 : vector<8x256xf32>
    %253 = arith.addf %244, %252 : vector<8x256xf32>
    %c0_149 = arith.constant 0 : index
    %c3_150 = arith.constant 3 : index
    %c32_151 = arith.constant 32 : index
    %254 = vector.load %arg1[%c0_149, %c3_150, %c32_151] : memref<1x4x290xf32, #tpu.memory_space<vmem>>, vector<1x1x256xf32>
    %255 = vector.shape_cast %254 : vector<1x1x256xf32> to vector<1x256xf32>
    %c27 = arith.constant 27 : index
    %c0_152 = arith.constant 0 : index
    %c0_153 = arith.constant 0 : index
    %256 = vector.load %arg2[%c27, %c0_152, %c0_153] : memref<36x8x1xf32, #tpu.memory_space<vmem>>, vector<1x8x1xf32>
    %257 = vector.shape_cast %256 : vector<1x8x1xf32> to vector<8x1xf32>
    %258 = arith.mulf %255, %226 : vector<1x256xf32>
    %259 = vector.broadcast %257 : vector<8x1xf32> to vector<8x256xf32>
    %260 = vector.broadcast %258 : vector<1x256xf32> to vector<8x256xf32>
    %261 = arith.mulf %259, %260 : vector<8x256xf32>
    %262 = arith.addf %253, %261 : vector<8x256xf32>
    %c1_154 = arith.constant 1 : index
    %c0_155 = arith.constant 0 : index
    %263 = vector.load %arg6[%c1_154, %c0_155] : memref<3x256xf32, #tpu.memory_space<vmem>>, vector<1x256xf32>
    %c0_156 = arith.constant 0 : index
    %c0_157 = arith.constant 0 : index
    %c33 = arith.constant 33 : index
    %264 = vector.load %arg1[%c0_156, %c0_157, %c33] : memref<1x4x290xf32, #tpu.memory_space<vmem>>, vector<1x1x256xf32>
    %265 = vector.shape_cast %264 : vector<1x1x256xf32> to vector<1x256xf32>
    %c28 = arith.constant 28 : index
    %c0_158 = arith.constant 0 : index
    %c0_159 = arith.constant 0 : index
    %266 = vector.load %arg2[%c28, %c0_158, %c0_159] : memref<36x8x1xf32, #tpu.memory_space<vmem>>, vector<1x8x1xf32>
    %267 = vector.shape_cast %266 : vector<1x8x1xf32> to vector<8x1xf32>
    %268 = arith.mulf %265, %263 : vector<1x256xf32>
    %269 = vector.broadcast %267 : vector<8x1xf32> to vector<8x256xf32>
    %270 = vector.broadcast %268 : vector<1x256xf32> to vector<8x256xf32>
    %271 = arith.mulf %269, %270 : vector<8x256xf32>
    %272 = arith.addf %262, %271 : vector<8x256xf32>
    %c0_160 = arith.constant 0 : index
    %c1_161 = arith.constant 1 : index
    %c33_162 = arith.constant 33 : index
    %273 = vector.load %arg1[%c0_160, %c1_161, %c33_162] : memref<1x4x290xf32, #tpu.memory_space<vmem>>, vector<1x1x256xf32>
    %274 = vector.shape_cast %273 : vector<1x1x256xf32> to vector<1x256xf32>
    %c29 = arith.constant 29 : index
    %c0_163 = arith.constant 0 : index
    %c0_164 = arith.constant 0 : index
    %275 = vector.load %arg2[%c29, %c0_163, %c0_164] : memref<36x8x1xf32, #tpu.memory_space<vmem>>, vector<1x8x1xf32>
    %276 = vector.shape_cast %275 : vector<1x8x1xf32> to vector<8x1xf32>
    %277 = arith.mulf %274, %263 : vector<1x256xf32>
    %278 = vector.broadcast %276 : vector<8x1xf32> to vector<8x256xf32>
    %279 = vector.broadcast %277 : vector<1x256xf32> to vector<8x256xf32>
    %280 = arith.mulf %278, %279 : vector<8x256xf32>
    %281 = arith.addf %272, %280 : vector<8x256xf32>
    %c0_165 = arith.constant 0 : index
    %c2_166 = arith.constant 2 : index
    %c33_167 = arith.constant 33 : index
    %282 = vector.load %arg1[%c0_165, %c2_166, %c33_167] : memref<1x4x290xf32, #tpu.memory_space<vmem>>, vector<1x1x256xf32>
    %283 = vector.shape_cast %282 : vector<1x1x256xf32> to vector<1x256xf32>
    %c30 = arith.constant 30 : index
    %c0_168 = arith.constant 0 : index
    %c0_169 = arith.constant 0 : index
    %284 = vector.load %arg2[%c30, %c0_168, %c0_169] : memref<36x8x1xf32, #tpu.memory_space<vmem>>, vector<1x8x1xf32>
    %285 = vector.shape_cast %284 : vector<1x8x1xf32> to vector<8x1xf32>
    %286 = arith.mulf %283, %263 : vector<1x256xf32>
    %287 = vector.broadcast %285 : vector<8x1xf32> to vector<8x256xf32>
    %288 = vector.broadcast %286 : vector<1x256xf32> to vector<8x256xf32>
    %289 = arith.mulf %287, %288 : vector<8x256xf32>
    %290 = arith.addf %281, %289 : vector<8x256xf32>
    %c0_170 = arith.constant 0 : index
    %c3_171 = arith.constant 3 : index
    %c33_172 = arith.constant 33 : index
    %291 = vector.load %arg1[%c0_170, %c3_171, %c33_172] : memref<1x4x290xf32, #tpu.memory_space<vmem>>, vector<1x1x256xf32>
    %292 = vector.shape_cast %291 : vector<1x1x256xf32> to vector<1x256xf32>
    %c31 = arith.constant 31 : index
    %c0_173 = arith.constant 0 : index
    %c0_174 = arith.constant 0 : index
    %293 = vector.load %arg2[%c31, %c0_173, %c0_174] : memref<36x8x1xf32, #tpu.memory_space<vmem>>, vector<1x8x1xf32>
    %294 = vector.shape_cast %293 : vector<1x8x1xf32> to vector<8x1xf32>
    %295 = arith.mulf %292, %263 : vector<1x256xf32>
    %296 = vector.broadcast %294 : vector<8x1xf32> to vector<8x256xf32>
    %297 = vector.broadcast %295 : vector<1x256xf32> to vector<8x256xf32>
    %298 = arith.mulf %296, %297 : vector<8x256xf32>
    %299 = arith.addf %290, %298 : vector<8x256xf32>
    %c2_175 = arith.constant 2 : index
    %c0_176 = arith.constant 0 : index
    %300 = vector.load %arg6[%c2_175, %c0_176] : memref<3x256xf32, #tpu.memory_space<vmem>>, vector<1x256xf32>
    %c0_177 = arith.constant 0 : index
    %c0_178 = arith.constant 0 : index
    %c34 = arith.constant 34 : index
    %301 = vector.load %arg1[%c0_177, %c0_178, %c34] : memref<1x4x290xf32, #tpu.memory_space<vmem>>, vector<1x1x256xf32>
    %302 = vector.shape_cast %301 : vector<1x1x256xf32> to vector<1x256xf32>
    %c32_179 = arith.constant 32 : index
    %c0_180 = arith.constant 0 : index
    %c0_181 = arith.constant 0 : index
    %303 = vector.load %arg2[%c32_179, %c0_180, %c0_181] : memref<36x8x1xf32, #tpu.memory_space<vmem>>, vector<1x8x1xf32>
    %304 = vector.shape_cast %303 : vector<1x8x1xf32> to vector<8x1xf32>
    %305 = arith.mulf %302, %300 : vector<1x256xf32>
    %306 = vector.broadcast %304 : vector<8x1xf32> to vector<8x256xf32>
    %307 = vector.broadcast %305 : vector<1x256xf32> to vector<8x256xf32>
    %308 = arith.mulf %306, %307 : vector<8x256xf32>
    %309 = arith.addf %299, %308 : vector<8x256xf32>
    %c0_182 = arith.constant 0 : index
    %c1_183 = arith.constant 1 : index
    %c34_184 = arith.constant 34 : index
    %310 = vector.load %arg1[%c0_182, %c1_183, %c34_184] : memref<1x4x290xf32, #tpu.memory_space<vmem>>, vector<1x1x256xf32>
    %311 = vector.shape_cast %310 : vector<1x1x256xf32> to vector<1x256xf32>
    %c33_185 = arith.constant 33 : index
    %c0_186 = arith.constant 0 : index
    %c0_187 = arith.constant 0 : index
    %312 = vector.load %arg2[%c33_185, %c0_186, %c0_187] : memref<36x8x1xf32, #tpu.memory_space<vmem>>, vector<1x8x1xf32>
    %313 = vector.shape_cast %312 : vector<1x8x1xf32> to vector<8x1xf32>
    %314 = arith.mulf %311, %300 : vector<1x256xf32>
    %315 = vector.broadcast %313 : vector<8x1xf32> to vector<8x256xf32>
    %316 = vector.broadcast %314 : vector<1x256xf32> to vector<8x256xf32>
    %317 = arith.mulf %315, %316 : vector<8x256xf32>
    %318 = arith.addf %309, %317 : vector<8x256xf32>
    %c0_188 = arith.constant 0 : index
    %c2_189 = arith.constant 2 : index
    %c34_190 = arith.constant 34 : index
    %319 = vector.load %arg1[%c0_188, %c2_189, %c34_190] : memref<1x4x290xf32, #tpu.memory_space<vmem>>, vector<1x1x256xf32>
    %320 = vector.shape_cast %319 : vector<1x1x256xf32> to vector<1x256xf32>
    %c34_191 = arith.constant 34 : index
    %c0_192 = arith.constant 0 : index
    %c0_193 = arith.constant 0 : index
    %321 = vector.load %arg2[%c34_191, %c0_192, %c0_193] : memref<36x8x1xf32, #tpu.memory_space<vmem>>, vector<1x8x1xf32>
    %322 = vector.shape_cast %321 : vector<1x8x1xf32> to vector<8x1xf32>
    %323 = arith.mulf %320, %300 : vector<1x256xf32>
    %324 = vector.broadcast %322 : vector<8x1xf32> to vector<8x256xf32>
    %325 = vector.broadcast %323 : vector<1x256xf32> to vector<8x256xf32>
    %326 = arith.mulf %324, %325 : vector<8x256xf32>
    %327 = arith.addf %318, %326 : vector<8x256xf32>
    %c0_194 = arith.constant 0 : index
    %c3_195 = arith.constant 3 : index
    %c34_196 = arith.constant 34 : index
    %328 = vector.load %arg1[%c0_194, %c3_195, %c34_196] : memref<1x4x290xf32, #tpu.memory_space<vmem>>, vector<1x1x256xf32>
    %329 = vector.shape_cast %328 : vector<1x1x256xf32> to vector<1x256xf32>
    %c35 = arith.constant 35 : index
    %c0_197 = arith.constant 0 : index
    %c0_198 = arith.constant 0 : index
    %330 = vector.load %arg2[%c35, %c0_197, %c0_198] : memref<36x8x1xf32, #tpu.memory_space<vmem>>, vector<1x8x1xf32>
    %331 = vector.shape_cast %330 : vector<1x8x1xf32> to vector<8x1xf32>
    %332 = arith.mulf %329, %300 : vector<1x256xf32>
    %333 = vector.broadcast %331 : vector<8x1xf32> to vector<8x256xf32>
    %334 = vector.broadcast %332 : vector<1x256xf32> to vector<8x256xf32>
    %335 = arith.mulf %333, %334 : vector<8x256xf32>
    %336 = arith.addf %327, %335 : vector<8x256xf32>
    %c0_199 = arith.constant 0 : index
    %c0_200 = arith.constant 0 : index
    %337 = vector.load %arg3[%c0_199, %c0_200] : memref<8x1xf32, #tpu.memory_space<vmem>>, vector<8x1xf32>
    %338 = vector.broadcast %337 : vector<8x1xf32> to vector<8x256xf32>
    %339 = arith.addf %336, %338 : vector<8x256xf32>
    %340 = arith.index_cast %arg0 : i32 to index
    %c0_201 = arith.constant 0 : index
    %c0_202 = arith.constant 0 : index
    %341 = vector.load %arg7[%340, %c0_201, %c0_202] : memref<2x8x256xf32, #tpu.memory_space<vmem>>, vector<1x8x256xf32>
    %342 = vector.shape_cast %341 : vector<1x8x256xf32> to vector<8x256xf32>
    %343 = vector.shape_cast %339 : vector<8x256xf32> to vector<1x8x256xf32>
    tpu.vector_store %arg7[%340, %c0_201, %c0_202], %343 {strides = array<i32>} : memref<2x8x256xf32, #tpu.memory_space<vmem>>, vector<1x8x256xf32>,
    %c0_203 = arith.constant 0 : index
    %c0_204 = arith.constant 0 : index
    %344 = vector.load %arg8[%c0_203, %c0_204] : memref<8x1xf32, #tpu.memory_space<vmem>>, vector<8x1xf32>
    %cst_205 = arith.constant dense<0.000000e+00> : vector<8xf32>
    %345 = vector.multi_reduction <add>, %339, %cst_205 [1] : vector<8x256xf32> to vector<8xf32>
    %346 = vector.shape_cast %345 : vector<8xf32> to vector<8x1xf32>
    %347 = arith.addf %344, %346 : vector<8x1xf32>
    %c0_206 = arith.constant 0 : index
    %c0_207 = arith.constant 0 : index
    %348 = vector.load %arg8[%c0_206, %c0_207] : memref<8x1xf32, #tpu.memory_space<vmem>>, vector<8x1xf32>
    tpu.vector_store %arg8[%c0_206, %c0_207], %347 {strides = array<i32>} : memref<8x1xf32, #tpu.memory_space<vmem>>, vector<8x1xf32>,
    %c0_208 = arith.constant 0 : index
    %c0_209 = arith.constant 0 : index
    %349 = vector.load %arg9[%c0_208, %c0_209] : memref<8x1xf32, #tpu.memory_space<vmem>>, vector<8x1xf32>
    %350 = arith.mulf %339, %339 : vector<8x256xf32>
    %cst_210 = arith.constant dense<0.000000e+00> : vector<8xf32>
    %351 = vector.multi_reduction <add>, %350, %cst_210 [1] : vector<8x256xf32> to vector<8xf32>
    %352 = vector.shape_cast %351 : vector<8xf32> to vector<8x1xf32>
    %353 = arith.addf %349, %352 : vector<8x1xf32>
    %c0_211 = arith.constant 0 : index
    %c0_212 = arith.constant 0 : index
    %354 = vector.load %arg9[%c0_211, %c0_212] : memref<8x1xf32, #tpu.memory_space<vmem>>, vector<8x1xf32>
    tpu.vector_store %arg9[%c0_211, %c0_212], %353 {strides = array<i32>} : memref<8x1xf32, #tpu.memory_space<vmem>>, vector<8x1xf32>,
    %c1_i32 = arith.constant 1 : i32
    %355 = arith.cmpi eq, %arg0, %c1_i32 : i32
    %356 = arith.extui %355 : i1 to i32
    %c0_i32_213 = arith.constant 0 : i32
    %357 = arith.cmpi ne, %356, %c0_i32_213 : i32
    scf.if %357 {
      %c0_214 = arith.constant 0 : index
      %c0_215 = arith.constant 0 : index
      %358 = vector.load %arg8[%c0_214, %c0_215] : memref<8x1xf32, #tpu.memory_space<vmem>>, vector<8x1xf32>
      %cst_216 = arith.constant 0.001953125 : f32
      %359 = vector.broadcast %cst_216 : f32 to vector<8x1xf32>
      %360 = arith.mulf %358, %359 : vector<8x1xf32>
      %c0_217 = arith.constant 0 : index
      %c0_218 = arith.constant 0 : index
      %361 = vector.load %arg9[%c0_217, %c0_218] : memref<8x1xf32, #tpu.memory_space<vmem>>, vector<8x1xf32>
      %cst_219 = arith.constant 0.001953125 : f32
      %362 = vector.broadcast %cst_219 : f32 to vector<8x1xf32>
      %363 = arith.mulf %361, %362 : vector<8x1xf32>
      %364 = arith.mulf %360, %360 : vector<8x1xf32>
      %365 = arith.subf %363, %364 : vector<8x1xf32>
      %cst_220 = arith.constant 0.000000e+00 : f32
      %366 = vector.broadcast %cst_220 : f32 to vector<8x1xf32>
      %367 = arith.maximumf %365, %366 : vector<8x1xf32>
      %cst_221 = arith.constant 9.99999974E-6 : f32
      %368 = vector.broadcast %cst_221 : f32 to vector<8x1xf32>
      %369 = arith.addf %367, %368 : vector<8x1xf32>
      %370 = math.rsqrt %369 : vector<8x1xf32>
      %c0_222 = arith.constant 0 : index
      %c0_223 = arith.constant 0 : index
      %371 = vector.load %arg4[%c0_222, %c0_223] : memref<8x1xf32, #tpu.memory_space<vmem>>, vector<8x1xf32>
      %372 = arith.mulf %371, %370 : vector<8x1xf32>
      %c0_224 = arith.constant 0 : index
      %c0_225 = arith.constant 0 : index
      %373 = vector.load %arg5[%c0_224, %c0_225] : memref<8x1xf32, #tpu.memory_space<vmem>>, vector<8x1xf32>
      %374 = arith.mulf %360, %372 : vector<8x1xf32>
      %375 = arith.subf %373, %374 : vector<8x1xf32>
      %c0_226 = arith.constant 0 : index
      %c0_227 = arith.constant 0 : index
      %c0_228 = arith.constant 0 : index
      %376 = vector.load %arg7[%c0_226, %c0_227, %c0_228] : memref<2x8x256xf32, #tpu.memory_space<vmem>>, vector<2x8x256xf32>
      %377 = vector.shape_cast %372 : vector<8x1xf32> to vector<1x8x1xf32>
      %378 = vector.broadcast %377 : vector<1x8x1xf32> to vector<2x8x256xf32>
      %379 = arith.mulf %376, %378 : vector<2x8x256xf32>
      %380 = vector.shape_cast %375 : vector<8x1xf32> to vector<1x8x1xf32>
      %381 = vector.broadcast %380 : vector<1x8x1xf32> to vector<2x8x256xf32>
      %382 = arith.addf %379, %381 : vector<2x8x256xf32>
      %cst_229 = arith.constant 0.000000e+00 : f32
      %383 = vector.broadcast %cst_229 : f32 to vector<2x8x256xf32>
      %384 = arith.maximumf %382, %383 : vector<2x8x256xf32>
      %c0_230 = arith.constant 0 : index
      %c0_231 = arith.constant 0 : index
      %c0_232 = arith.constant 0 : index
      %385 = vector.load %arg7[%c0_230, %c0_231, %c0_232] : memref<2x8x256xf32, #tpu.memory_space<vmem>>, vector<2x8x256xf32>
      tpu.vector_store %arg7[%c0_230, %c0_231, %c0_232], %384 {strides = array<i32>} : memref<2x8x256xf32, #tpu.memory_space<vmem>>, vector<2x8x256xf32>,
    } else {
    }
    return
  }
  func.func @transform_0(%arg0: i32) -> (i32, i32, i32) {
    %c0_i32 = arith.constant 0 : i32
    %c0_i32_0 = arith.constant 0 : i32
    %c0_i32_1 = arith.constant 0 : i32
    return %arg0, %c0_i32, %c0_i32_0 : i32, i32, i32
  }
  func.func @transform_1(%arg0: i32) -> (i32, i32, i32) {
    %c0_i32 = arith.constant 0 : i32
    %c0_i32_0 = arith.constant 0 : i32
    %c0_i32_1 = arith.constant 0 : i32
    %c0_i32_2 = arith.constant 0 : i32
    return %c0_i32, %c0_i32_0, %c0_i32_1 : i32, i32, i32
  }
  func.func @transform_2(%arg0: i32) -> (i32, i32) {
    %c0_i32 = arith.constant 0 : i32
    %c0_i32_0 = arith.constant 0 : i32
    %c0_i32_1 = arith.constant 0 : i32
    return %c0_i32, %c0_i32_0 : i32, i32
  }
  func.func @transform_3(%arg0: i32) -> (i32, i32) {
    %c0_i32 = arith.constant 0 : i32
    %c0_i32_0 = arith.constant 0 : i32
    %c0_i32_1 = arith.constant 0 : i32
    return %c0_i32, %c0_i32_0 : i32, i32
  }
  func.func @transform_4(%arg0: i32) -> (i32, i32) {
    %c0_i32 = arith.constant 0 : i32
    %c0_i32_0 = arith.constant 0 : i32
    %c0_i32_1 = arith.constant 0 : i32
    return %c0_i32, %c0_i32_0 : i32, i32
  }
  func.func @transform_5(%arg0: i32) -> (i32, i32) {
    %c0_i32 = arith.constant 0 : i32
    %c0_i32_0 = arith.constant 0 : i32
    %c0_i32_1 = arith.constant 0 : i32
    return %c0_i32, %c0_i32_0 : i32, i32
  }
  func.func @transform_6(%arg0: i32) -> (i32, i32, i32) {
    %c0_i32 = arith.constant 0 : i32
    %c0_i32_0 = arith.constant 0 : i32
    %c0_i32_1 = arith.constant 0 : i32
    %c0_i32_2 = arith.constant 0 : i32
    return %c0_i32, %c0_i32_0, %c0_i32_1 : i32, i32, i32
  }
}

</mosaic_0001>

<llo_original>
// kernel: conv_bn_relu.1
$region0: #{conv_bn_relu.1}
  #allocation0 [shape = 'u32[]', space=smem, size = 0x4, offset = 0x4, fixed_abs, tag = 'smem constant byte address 0x4 - core index']
  #allocation1 [shape = 'u32[72,128]{1,0:T(1,128)}', space=vmem, size = 0x9000, scoped, tag = 'internal scratch']
  #allocation2 [shape = 'f32[8,1]{1,0:T(8,128)}', space=vmem, size = 0x1000, scoped, tag = 'scratch operand']
  #allocation3 [shape = 'f32[8,1]{1,0:T(8,128)}', space=vmem, size = 0x1000, scoped, tag = 'scratch operand']
  %s0 = inlined_call_operand.vmem [shape: f32[2,4,290], index: 0, kind: input, shape index: {}]
  %s1 = inlined_call_operand.vmem [shape: f32[36,8,1], index: 1, kind: input, shape index: {}]
  %s2 = inlined_call_operand.vmem [shape: f32[8,1], index: 2, kind: input, shape index: {}]
  %s3 = inlined_call_operand.vmem [shape: f32[8,1], index: 3, kind: input, shape index: {}]
  %s4 = inlined_call_operand.vmem [shape: f32[8,1], index: 4, kind: input, shape index: {}]
  %s5 = inlined_call_operand.vmem [shape: f32[3,256], index: 5, kind: input, shape index: {}]
  %s6 = inlined_call_operand.vmem [shape: f32[2,8,256], index: 6, kind: output, shape index: {}]
  %s7 = sld [smem:[#allocation0]]
  $region65: #{conv_bn_relu.1} parent=0
    _
  %s9 = ssub.s32 1, %s7
  %s10 = scalar_select 0, %s9, %s7
  loop: start=0, step=1, limit=4
  $region2: #{conv_bn_relu.1} parent=0 // loop_pre_header
    _
  $region3: #{conv_bn_relu.1} parent=0 // loop_header
    %s12 = sphi 0, %s16
    %p13 = scmp.ge.s32.totalorder %s12, 4
    %s22 = sphi 0, %s24
    %s25 = sphi 0, %s22
    %s26 = sphi 0, %s25
    %s42 = sphi 0, %s26
    %s46 = sphi 0, %s46
    %s48 = sphi 0, %s46
    %s49 = sphi 0, %s48
    %s63 = sphi 0, %s49
    %s67 = sphi 0, %s67
    %s69 = sphi 0, %s67
    %s70 = sphi 0, %s69
    %s84 = sphi 0, %s70
    %s88 = sphi 0, %s88
    %s90 = sphi 0, %s88
    %s91 = sphi 0, %s90
    %s105 = sphi 0, %s91
    %s109 = sphi 0, %s109
    %s111 = sphi 0, %s109
    %s112 = sphi 0, %s111
    %s126 = sphi 0, %s112
    %s130 = sphi 0, %s130
    %s132 = sphi 0, %s130
    %s133 = sphi 0, %s132
    %s147 = sphi 0, %s133
    %s151 = sphi 0, %s151
    %s153 = sphi 0, %s151
    %s154 = sphi 0, %s153
    %s168 = sphi 0, %s154
  $region4: #{conv_bn_relu.1} parent=0 // loop_header_branch
    %15 = sbr.rel (%p13) target = $region8
  $region5: #{conv_bn_relu.1} parent=0 // loop_body
    %s17 = ssub.s32 %s12, 1
    %s18 = ssub.s32 %s12, 2
    %s19 = sadd.s32 %s12, 1
    %s20 = ssub.s32 %s12, %s19
    %p21 = scmp.eq.s32.totalorder %s20, 0
    %s23 = sadd.s32 %s22, 1
    %s24 = scalar_select %p21, %s22, %s23
    %p27 = pneg %p21
    %p28 = scmp.eq.s32.totalorder %s12, 1
    %p29 = por %p27, %p28
    %p30 = scmp.ne.s32.totalorder %s22, %s25
    %p31 = scmp.eq.s32.totalorder %s12, 0
    %p32 = por %p30, %p31
    %p33 = scmp.ne.s32.totalorder %s22, %s25
    %p34 = scmp.eq.s32.totalorder %s17, 1
    %p35 = por %p33, %p34
    %p36 = scmp.ne.s32.totalorder %s25, %s26
    %p37 = scmp.eq.s32.totalorder %s17, 0
    %p38 = por %p36, %p37
    %p39 = scmp.ne.s32.totalorder %s25, %s26
    %p40 = scmp.eq.s32.totalorder %s18, 1
    %p41 = por %p39, %p40
    %p43 = scmp.ne.s32.totalorder %s26, %s42
    %p44 = scmp.eq.s32.totalorder %s18, 0
    %p45 = por %p43, %p44
    %s47 = sadd.s32 %s46, 1
    %p50 = scmp.eq.s32.totalorder %s12, 1
    %p51 = scmp.ne.s32.totalorder %s46, %s48
    %p52 = scmp.eq.s32.totalorder %s12, 0
    %p53 = por %p51, %p52
    %p54 = scmp.ne.s32.totalorder %s46, %s48
    %p55 = scmp.eq.s32.totalorder %s17, 1
    %p56 = por %p54, %p55
    %p57 = scmp.ne.s32.totalorder %s48, %s49
    %p58 = scmp.eq.s32.totalorder %s17, 0
    %p59 = por %p57, %p58
    %p60 = scmp.ne.s32.totalorder %s48, %s49
    %p61 = scmp.eq.s32.totalorder %s18, 1
    %p62 = por %p60, %p61
    %p64 = scmp.ne.s32.totalorder %s49, %s63
    %p65 = scmp.eq.s32.totalorder %s18, 0
    %p66 = por %p64, %p65
    %s68 = sadd.s32 %s67, 1
    %p71 = scmp.eq.s32.totalorder %s12, 1
    %p72 = scmp.ne.s32.totalorder %s67, %s69
    %p73 = scmp.eq.s32.totalorder %s12, 0
    %p74 = por %p72, %p73
    %p75 = scmp.ne.s32.totalorder %s67, %s69
    %p76 = scmp.eq.s32.totalorder %s17, 1
    %p77 = por %p75, %p76
    %p78 = scmp.ne.s32.totalorder %s69, %s70
    %p79 = scmp.eq.s32.totalorder %s17, 0
    %p80 = por %p78, %p79
    %p81 = scmp.ne.s32.totalorder %s69, %s70
    %p82 = scmp.eq.s32.totalorder %s18, 1
    %p83 = por %p81, %p82
    %p85 = scmp.ne.s32.totalorder %s70, %s84
    %p86 = scmp.eq.s32.totalorder %s18, 0
    %p87 = por %p85, %p86
    %s89 = sadd.s32 %s88, 1
    %p92 = scmp.eq.s32.totalorder %s12, 1
    %p93 = scmp.ne.s32.totalorder %s88, %s90
    %p94 = scmp.eq.s32.totalorder %s12, 0
    %p95 = por %p93, %p94
    %p96 = scmp.ne.s32.totalorder %s88, %s90
    %p97 = scmp.eq.s32.totalorder %s17, 1
    %p98 = por %p96, %p97
    %p99 = scmp.ne.s32.totalorder %s90, %s91
    %p100 = scmp.eq.s32.totalorder %s17, 0
    %p101 = por %p99, %p100
    %p102 = scmp.ne.s32.totalorder %s90, %s91
    %p103 = scmp.eq.s32.totalorder %s18, 1
    %p104 = por %p102, %p103
    %p106 = scmp.ne.s32.totalorder %s91, %s105
    %p107 = scmp.eq.s32.totalorder %s18, 0
    %p108 = por %p106, %p107
    %s110 = sadd.s32 %s109, 1
    %p113 = scmp.eq.s32.totalorder %s12, 1
    %p114 = scmp.ne.s32.totalorder %s109, %s111
    %p115 = scmp.eq.s32.totalorder %s12, 0
    %p116 = por %p114, %p115
    %p117 = scmp.ne.s32.totalorder %s109, %s111
    %p118 = scmp.eq.s32.totalorder %s17, 1
    %p119 = por %p117, %p118
    %p120 = scmp.ne.s32.totalorder %s111, %s112
    %p121 = scmp.eq.s32.totalorder %s17, 0
    %p122 = por %p120, %p121
    %p123 = scmp.ne.s32.totalorder %s111, %s112
    %p124 = scmp.eq.s32.totalorder %s18, 1
    %p125 = por %p123, %p124
    %p127 = scmp.ne.s32.totalorder %s112, %s126
    %p128 = scmp.eq.s32.totalorder %s18, 0
    %p129 = por %p127, %p128
    %s131 = sadd.s32 %s130, 1
    %p134 = scmp.eq.s32.totalorder %s12, 1
    %p135 = scmp.ne.s32.totalorder %s130, %s132
    %p136 = scmp.eq.s32.totalorder %s12, 0
    %p137 = por %p135, %p136
    %p138 = scmp.ne.s32.totalorder %s130, %s132
    %p139 = scmp.eq.s32.totalorder %s17, 1
    %p140 = por %p138, %p139
    %p141 = scmp.ne.s32.totalorder %s132, %s133
    %p142 = scmp.eq.s32.totalorder %s17, 0
    %p143 = por %p141, %p142
    %p144 = scmp.ne.s32.totalorder %s132, %s133
    %p145 = scmp.eq.s32.totalorder %s18, 1
    %p146 = por %p144, %p145
    %p148 = scmp.ne.s32.totalorder %s133, %s147
    %p149 = scmp.eq.s32.totalorder %s18, 0
    %p150 = por %p148, %p149
    %s152 = sadd.s32 %s151, 1
    %p155 = scmp.eq.s32.totalorder %s12, 1
    %p156 = scmp.ne.s32.totalorder %s151, %s153
    %p157 = scmp.eq.s32.totalorder %s12, 0
    %p158 = por %p156, %p157
    %p159 = scmp.ne.s32.totalorder %s151, %s153
    %p160 = scmp.eq.s32.totalorder %s17, 1
    %p161 = por %p159, %p160
    %p162 = scmp.ne.s32.totalorder %s153, %s154
    %p163 = scmp.eq.s32.totalorder %s17, 0
    %p164 = por %p162, %p163
    %p165 = scmp.ne.s32.totalorder %s153, %s154
    %p166 = scmp.eq.s32.totalorder %s18, 1
    %p167 = por %p165, %p166
    %p169 = scmp.ne.s32.totalorder %s154, %s168
    %p170 = scmp.eq.s32.totalorder %s18, 0
    %p171 = por %p169, %p170
    %p172 = scmp.le.s32.totalorder 1, %s12
    %p173 = scmp.lt.s32.totalorder %s12, 3
    %p174 = pnand %p172, %p173
    %p175 = pneg %p174
    // Predicated region
    $region9: #{conv_bn_relu.1} parent=5 // pred_check
      _
    $region10: #{conv_bn_relu.1} parent=5 // pred_check_branch
      %177 = sbr.rel (%p174) target = $region12
    $region11: #{conv_bn_relu.1} parent=5 // pred_region
      %s178 = ssub.s32 %s12, 1
      // Predicated region
      $region13: #{conv_bn_relu.1} parent=11 // pred_check
        %p179 = pneg %p59
      $region14: #{conv_bn_relu.1} parent=11 // pred_check_branch
        %181 = sbr.rel (%p179) target = $region16
      $region15: #{conv_bn_relu.1} parent=11 // pred_region
        _
      $region16: #{conv_bn_relu.1} parent=11 // pred_fallthru
        _
      // Predicated region
      $region17: #{conv_bn_relu.1} parent=11 // pred_check
        %p182 = pneg %p80
      $region18: #{conv_bn_relu.1} parent=11 // pred_check_branch
        %184 = sbr.rel (%p182) target = $region20
      $region19: #{conv_bn_relu.1} parent=11 // pred_region
        _
      $region20: #{conv_bn_relu.1} parent=11 // pred_fallthru
        _
      // Predicated region
      $region21: #{conv_bn_relu.1} parent=11 // pred_check
        %p185 = pneg %p101
      $region22: #{conv_bn_relu.1} parent=11 // pred_check_branch
        %187 = sbr.rel (%p185) target = $region24
      $region23: #{conv_bn_relu.1} parent=11 // pred_region
        _
      $region24: #{conv_bn_relu.1} parent=11 // pred_fallthru
        _
      // Predicated region
      $region25: #{conv_bn_relu.1} parent=11 // pred_check
        %p188 = pneg %p122
      $region26: #{conv_bn_relu.1} parent=11 // pred_check_branch
        %190 = sbr.rel (%p188) target = $region28
      $region27: #{conv_bn_relu.1} parent=11 // pred_region
        _
      $region28: #{conv_bn_relu.1} parent=11 // pred_fallthru
        _
      // Predicated region
      $region29: #{conv_bn_relu.1} parent=11 // pred_check
        %p191 = pneg %p143
      $region30: #{conv_bn_relu.1} parent=11 // pred_check_branch
        %193 = sbr.rel (%p191) target = $region32
      $region31: #{conv_bn_relu.1} parent=11 // pred_region
        _
      $region32: #{conv_bn_relu.1} parent=11 // pred_fallthru
        _
    $region12: #{conv_bn_relu.1} parent=5 // pred_fallthru
      _
    %p194 = scmp.lt.s32.totalorder %s12, 2
    // Predicated region
    $region33: #{conv_bn_relu.1} parent=5 // pred_check
      %p195 = pneg %p194
    $region34: #{conv_bn_relu.1} parent=5 // pred_check_branch
      %197 = sbr.rel (%p195) target = $region36
    $region35: #{conv_bn_relu.1} parent=5 // pred_region
      // Predicated region
      $region37: #{conv_bn_relu.1} parent=35 // pred_check
        %p198 = pneg %p32
      $region38: #{conv_bn_relu.1} parent=35 // pred_check_branch
        %200 = sbr.rel (%p198) target = $region40
      $region39: #{conv_bn_relu.1} parent=35 // pred_region
        %p201 = scmp.lt.s32.totalorder %s12, 1
        %s202 = scalar_select %p201, %s12, 1
        %s203 = smul.addr %s202, 3
        %s204 = smul.addr %s203, 4
        %s205 = scalar_lea.vmem %s0, %s204
      $region40: #{conv_bn_relu.1} parent=35 // pred_fallthru
        _
    $region36: #{conv_bn_relu.1} parent=5 // pred_fallthru
      _
    %p206 = scmp.le.s32.totalorder 1, %s12
    %p207 = scmp.lt.s32.totalorder %s12, 3
    %p208 = pnand %p206, %p207
    %p209 = pneg %p208
    // Predicated region
    $region41: #{conv_bn_relu.1} parent=5 // pred_check
      _
    $region42: #{conv_bn_relu.1} parent=5 // pred_check_branch
      %211 = sbr.rel (%p208) target = $region44
    $region43: #{conv_bn_relu.1} parent=5 // pred_region
      %s212 = ssub.s32 %s12, 1
      %p213 = scmp.lt.s32.totalorder %s17, 1
      %s214 = scalar_select %p213, %s17, 1
      %s215 = smul.addr %s214, 3
      %s216 = smul.addr %s215, 4
      %s217 = scalar_lea.vmem %s0, %s216
      %p218 = pneg %p38
      %p219 = pneg %p35
      %p220 = pneg %p59
      %p221 = pneg %p56
      %p222 = pneg %p80
      %p223 = pneg %p77
      %p224 = pneg %p101
      %p225 = pneg %p98
      %p226 = pneg %p122
      %p227 = pneg %p119
      %p228 = pneg %p143
      %p229 = pneg %p140
      %p230 = pneg %p164
      %p231 = pneg %p161
      %p232 = scmp.lt.s32.totalorder %s17, 1
      %s233 = scalar_select %p232, %s17, 1
      %s234 = smul.addr %s233, 3
      %s235 = smul.addr %s234, 4
      %s236 = scalar_lea.vmem %s0, %s235
      %p237 = scmp.eq.s32.totalorder %s17, 0
      // Predicated region
      $region45: #{conv_bn_relu.1} parent=43 // pred_check
        %p238 = pneg %p237
      $region46: #{conv_bn_relu.1} parent=43 // pred_check_branch
        %240 = sbr.rel (%p238) target = $region48
      $region47: #{conv_bn_relu.1} parent=43 // pred_region
        %vm241 = vcmask 7168
        %242 = vst.msk [vmem:[#allocation2] sm:$0xff] %vm241, 0.0
        %243 = vst.msk [vmem:[#allocation3] sm:$0xff] %vm241, 0.0
      $region48: #{conv_bn_relu.1} parent=43 // pred_fallthru
        _
      %v244 = vld [vmem:[%s5] ss:$4 sm:$0x3]
      %v245 = vld [vmem:[%s236] ss:$4 sm:$0x3]
      %v246 = vld [vmem:[%s1] sm:$0xff]
      %v247 = vmul.f32 %v245, %v244
      %249 = vset.pattern.permute.xlu0 0
      %250 = vperm.xlu0 %249, %v246
      %v251 = vpop.permute.xlu0 %250
      %v254 = vperm.slane %v247, 0
      %v255 = vperm.slane %v247, 1
      %v258 = vmul.f32 %v251, %v254
      %v259 = vmul.f32 %v251, %v255
      %v260 = vadd.f32 %v258, 0.0
      %v261 = vadd.f32 %v259, 0.0
      %s262 = scalar_lea.vmem %s236, 1
      %v263 = vld [vmem:[%s262] ss:$4 sm:$0x3]
      %s264 = scalar_lea.vmem %s1, 8
      %v265 = vld [vmem:[%s264] sm:$0xff]
      %v266 = vmul.f32 %v263, %v244
      %268 = vset.pattern.permute.xlu0 0
      %269 = vperm.xlu0 %268, %v265
      %v270 = vpop.permute.xlu0 %269
      %v273 = vperm.slane %v266, 0
      %v274 = vperm.slane %v266, 1
      %v277 = vmul.f32 %v270, %v273
      %v278 = vmul.f32 %v270, %v274
      %v279 = vadd.f32 %v260, %v277
      %v280 = vadd.f32 %v261, %v278
      %s281 = scalar_lea.vmem %s236, 2
      %v282 = vld [vmem:[%s281] ss:$4 sm:$0x3]
      %s283 = scalar_lea.vmem %s1, 16
      %v284 = vld [vmem:[%s283] sm:$0xff]
      %v285 = vmul.f32 %v282, %v244
      %287 = vset.pattern.permute.xlu0 0
      %288 = vperm.xlu0 %287, %v284
      %v289 = vpop.permute.xlu0 %288
      %v292 = vperm.slane %v285, 0
      %v293 = vperm.slane %v285, 1
      %v296 = vmul.f32 %v289, %v292
      %v297 = vmul.f32 %v289, %v293
      %v298 = vadd.f32 %v279, %v296
      %v299 = vadd.f32 %v280, %v297
      %s300 = scalar_lea.vmem %s236, 3
      %v301 = vld [vmem:[%s300] ss:$4 sm:$0x3]
      %s302 = scalar_lea.vmem %s1, 24
      %v303 = vld [vmem:[%s302] sm:$0xff]
      %v304 = vmul.f32 %v301, %v244
      %306 = vset.pattern.permute.xlu0 0
      %307 = vperm.xlu0 %306, %v303
      %v308 = vpop.permute.xlu0 %307
      %v311 = vperm.slane %v304, 0
      %v312 = vperm.slane %v304, 1
      %v315 = vmul.f32 %v308, %v311
      %v316 = vmul.f32 %v308, %v312
      %v317 = vadd.f32 %v298, %v315
      %v318 = vadd.f32 %v299, %v316
      %s319 = scalar_lea.vmem %s5, 1
      %v320 = vld [vmem:[%s319] ss:$4 sm:$0x3]
      %v321 = vld [vmem:[%s236] ss:$4 sm:$0x7]
      %s322 = scalar_lea.vmem %s1, 32
      %v323 = vld [vmem:[%s322] sm:$0xff]
      %325 = vrot.lane.b32.xlu0 %v320, 1
      %v326 = vpop.permute.xlu0 %325
      %v327 = vrot.slane %v326, 7
      %vm328 = vcmask 7168
      %v329 = vsel %vm328, %v327, %v326
      %v331 = vmul.f32 %v321, %v329
      %333 = vset.pattern.permute.xlu0 0
      %334 = vperm.xlu0 %333, %v323
      %v335 = vpop.permute.xlu0 %334
      %v338 = vperm.slane %v331, 0
      %v339 = vperm.slane %v331, 1
      %v340 = vperm.slane %v331, 2
      %v344 = vmul.f32 %v335, %v338
      %v345 = vmul.f32 %v335, %v339
      %v346 = vmul.f32 %v335, %v340
      %350 = vrot.lane.b32.xlu0 %v344, 127
      %v351 = vpop.permute.xlu0 %350
      %352 = vrot.lane.b32.xlu0 %v345, 127
      %v353 = vpop.permute.xlu0 %352
      %354 = vrot.lane.b32.xlu0 %v346, 127
      %v355 = vpop.permute.xlu0 %354
      %vm356 = vcmask 1039360
      %v357 = vsel %vm356, %v351, %v353
      %v358 = vsel %vm356, %v353, %v355
      %v361 = vadd.f32 %v317, %v357
      %v362 = vadd.f32 %v318, %v358
      %v363 = vld [vmem:[%s262] ss:$4 sm:$0x7]
      %s364 = scalar_lea.vmem %s1, 40
      %v365 = vld [vmem:[%s364] sm:$0xff]
      %v366 = vmul.f32 %v363, %v329
      %368 = vset.pattern.permute.xlu0 0
      %369 = vperm.xlu0 %368, %v365
      %v370 = vpop.permute.xlu0 %369
      %v373 = vperm.slane %v366, 0
      %v374 = vperm.slane %v366, 1
      %v375 = vperm.slane %v366, 2
      %v379 = vmul.f32 %v370, %v373
      %v380 = vmul.f32 %v370, %v374
      %v381 = vmul.f32 %v370, %v375
      %385 = vrot.lane.b32.xlu0 %v379, 127
      %v386 = vpop.permute.xlu0 %385
      %387 = vrot.lane.b32.xlu0 %v380, 127
      %v388 = vpop.permute.xlu0 %387
      %389 = vrot.lane.b32.xlu0 %v381, 127
      %v390 = vpop.permute.xlu0 %389
      %v391 = vsel %vm356, %v386, %v388
      %v392 = vsel %vm356, %v388, %v390
      %v395 = vadd.f32 %v361, %v391
      %v396 = vadd.f32 %v362, %v392
      %v397 = vld [vmem:[%s281] ss:$4 sm:$0x7]
      %s398 = scalar_lea.vmem %s1, 48
      %v399 = vld [vmem:[%s398] sm:$0xff]
      %v400 = vmul.f32 %v397, %v329
      %402 = vset.pattern.permute.xlu0 0
      %403 = vperm.xlu0 %402, %v399
      %v404 = vpop.permute.xlu0 %403
      %v407 = vperm.slane %v400, 0
      %v408 = vperm.slane %v400, 1
      %v409 = vperm.slane %v400, 2
      %v413 = vmul.f32 %v404, %v407
      %v414 = vmul.f32 %v404, %v408
      %v415 = vmul.f32 %v404, %v409
      %419 = vrot.lane.b32.xlu0 %v413, 127
      %v420 = vpop.permute.xlu0 %419
      %421 = vrot.lane.b32.xlu0 %v414, 127
      %v422 = vpop.permute.xlu0 %421
      %423 = vrot.lane.b32.xlu0 %v415, 127
      %v424 = vpop.permute.xlu0 %423
      %v425 = vsel %vm356, %v420, %v422
      %v426 = vsel %vm356, %v422, %v424
      %v429 = vadd.f32 %v395, %v425
      %v430 = vadd.f32 %v396, %v426
      %v431 = vld [vmem:[%s300] ss:$4 sm:$0x7]
      %s432 = scalar_lea.vmem %s1, 56
      %v433 = vld [vmem:[%s432] sm:$0xff]
      %v434 = vmul.f32 %v431, %v329
      %436 = vset.pattern.permute.xlu0 0
      %437 = vperm.xlu0 %436, %v433
      %v438 = vpop.permute.xlu0 %437
      %v441 = vperm.slane %v434, 0
      %v442 = vperm.slane %v434, 1
      %v443 = vperm.slane %v434, 2
      %v447 = vmul.f32 %v438, %v441
      %v448 = vmul.f32 %v438, %v442
      %v449 = vmul.f32 %v438, %v443
      %453 = vrot.lane.b32.xlu0 %v447, 127
      %v454 = vpop.permute.xlu0 %453
      %455 = vrot.lane.b32.xlu0 %v448, 127
      %v456 = vpop.permute.xlu0 %455
      %457 = vrot.lane.b32.xlu0 %v449, 127
      %v458 = vpop.permute.xlu0 %457
      %v459 = vsel %vm356, %v454, %v456
      %v460 = vsel %vm356, %v456, %v458
      %v463 = vadd.f32 %v429, %v459
      %v464 = vadd.f32 %v430, %v460
      %s465 = scalar_lea.vmem %s5, 2
      %v466 = vld [vmem:[%s465] ss:$4 sm:$0x3]
      %s467 = scalar_lea.vmem %s1, 64
      %v468 = vld [vmem:[%s467] sm:$0xff]
      %470 = vrot.lane.b32.xlu0 %v466, 2
      %v471 = vpop.permute.xlu0 %470
      %v472 = vrot.slane %v471, 7
      %vm473 = vcmask 15360
      %v474 = vsel %vm473, %v472, %v471
      %v476 = vmul.f32 %v321, %v474
      %478 = vset.pattern.permute.xlu0 0
      %479 = vperm.xlu0 %478, %v468
      %v480 = vpop.permute.xlu0 %479
      %v483 = vperm.slane %v476, 0
      %v484 = vperm.slane %v476, 1
      %v485 = vperm.slane %v476, 2
      %v489 = vmul.f32 %v480, %v483
      %v490 = vmul.f32 %v480, %v484
      %v491 = vmul.f32 %v480, %v485
      %495 = vrot.lane.b32.xlu0 %v489, 126
      %v496 = vpop.permute.xlu0 %495
      %497 = vrot.lane.b32.xlu0 %v490, 126
      %v498 = vpop.permute.xlu0 %497
      %499 = vrot.lane.b32.xlu0 %v491, 126
      %v500 = vpop.permute.xlu0 %499
      %vm501 = vcmask 1031168
      %v502 = vsel %vm501, %v496, %v498
      %v503 = vsel %vm501, %v498, %v500
      %v506 = vadd.f32 %v463, %v502
      %v507 = vadd.f32 %v464, %v503
      %s508 = scalar_lea.vmem %s1, 72
      %v509 = vld [vmem:[%s508] sm:$0xff]
      %v510 = vmul.f32 %v363, %v474
      %512 = vset.pattern.permute.xlu0 0
      %513 = vperm.xlu0 %512, %v509
      %v514 = vpop.permute.xlu0 %513
      %v517 = vperm.slane %v510, 0
      %v518 = vperm.slane %v510, 1
      %v519 = vperm.slane %v510, 2
      %v523 = vmul.f32 %v514, %v517
      %v524 = vmul.f32 %v514, %v518
      %v525 = vmul.f32 %v514, %v519
      %529 = vrot.lane.b32.xlu0 %v523, 126
      %v530 = vpop.permute.xlu0 %529
      %531 = vrot.lane.b32.xlu0 %v524, 126
      %v532 = vpop.permute.xlu0 %531
      %533 = vrot.lane.b32.xlu0 %v525, 126
      %v534 = vpop.permute.xlu0 %533
      %v535 = vsel %vm501, %v530, %v532
      %v536 = vsel %vm501, %v532, %v534
      %v539 = vadd.f32 %v506, %v535
      %v540 = vadd.f32 %v507, %v536
      %s541 = scalar_lea.vmem %s1, 80
      %v542 = vld [vmem:[%s541] sm:$0xff]
      %v543 = vmul.f32 %v397, %v474
      %545 = vset.pattern.permute.xlu0 0
      %546 = vperm.xlu0 %545, %v542
      %v547 = vpop.permute.xlu0 %546
      %v550 = vperm.slane %v543, 0
      %v551 = vperm.slane %v543, 1
      %v552 = vperm.slane %v543, 2
      %v556 = vmul.f32 %v547, %v550
      %v557 = vmul.f32 %v547, %v551
      %v558 = vmul.f32 %v547, %v552
      %562 = vrot.lane.b32.xlu0 %v556, 126
      %v563 = vpop.permute.xlu0 %562
      %564 = vrot.lane.b32.xlu0 %v557, 126
      %v565 = vpop.permute.xlu0 %564
      %566 = vrot.lane.b32.xlu0 %v558, 126
      %v567 = vpop.permute.xlu0 %566
      %v568 = vsel %vm501, %v563, %v565
      %v569 = vsel %vm501, %v565, %v567
      %v572 = vadd.f32 %v539, %v568
      %v573 = vadd.f32 %v540, %v569
      %s574 = scalar_lea.vmem %s1, 88
      %v575 = vld [vmem:[%s574] sm:$0xff]
      %v576 = vmul.f32 %v431, %v474
      %578 = vset.pattern.permute.xlu0 0
      %579 = vperm.xlu0 %578, %v575
      %v580 = vpop.permute.xlu0 %579
      %v583 = vperm.slane %v576, 0
      %v584 = vperm.slane %v576, 1
      %v585 = vperm.slane %v576, 2
      %v589 = vmul.f32 %v580, %v583
      %v590 = vmul.f32 %v580, %v584
      %v591 = vmul.f32 %v580, %v585
      %595 = vrot.lane.b32.xlu0 %v589, 126
      %v596 = vpop.permute.xlu0 %595
      %597 = vrot.lane.b32.xlu0 %v590, 126
      %v598 = vpop.permute.xlu0 %597
      %599 = vrot.lane.b32.xlu0 %v591, 126
      %v600 = vpop.permute.xlu0 %599
      %v601 = vsel %vm501, %v596, %v598
      %v602 = vsel %vm501, %v598, %v600
      %v605 = vadd.f32 %v572, %v601
      %v606 = vadd.f32 %v573, %v602
      %s607 = scalar_lea.vmem %s1, 96
      %v608 = vld [vmem:[%s607] sm:$0xff]
      %610 = vrot.lane.b32.xlu0 %v244, 16
      %v611 = vpop.permute.xlu0 %610
      %v612 = vrot.slane %v611, 7
      %vm613 = vcmask 130048
      %v614 = vsel %vm613, %v612, %v611
      %v616 = vmul.f32 %v321, %v614
      %618 = vset.pattern.permute.xlu0 0
      %619 = vperm.xlu0 %618, %v608
      %v620 = vpop.permute.xlu0 %619
      %v623 = vperm.slane %v616, 0
      %v624 = vperm.slane %v616, 1
      %v625 = vperm.slane %v616, 2
      %v629 = vmul.f32 %v620, %v623
      %v630 = vmul.f32 %v620, %v624
      %v631 = vmul.f32 %v620, %v625
      %635 = vrot.lane.b32.xlu0 %v629, 112
      %v636 = vpop.permute.xlu0 %635
      %637 = vrot.lane.b32.xlu0 %v630, 112
      %v638 = vpop.permute.xlu0 %637
      %639 = vrot.lane.b32.xlu0 %v631, 112
      %v640 = vpop.permute.xlu0 %639
      %vm641 = vcmask 916480
      %v642 = vsel %vm641, %v636, %v638
      %v643 = vsel %vm641, %v638, %v640
      %v646 = vadd.f32 %v605, %v642
      %v647 = vadd.f32 %v606, %v643
      %s648 = scalar_lea.vmem %s1, 104
      %v649 = vld [vmem:[%s648] sm:$0xff]
      %v650 = vmul.f32 %v363, %v614
      %652 = vset.pattern.permute.xlu0 0
      %653 = vperm.xlu0 %652, %v649
      %v654 = vpop.permute.xlu0 %653
      %v657 = vperm.slane %v650, 0
      %v658 = vperm.slane %v650, 1
      %v659 = vperm.slane %v650, 2
      %v663 = vmul.f32 %v654, %v657
      %v664 = vmul.f32 %v654, %v658
      %v665 = vmul.f32 %v654, %v659
      %669 = vrot.lane.b32.xlu0 %v663, 112
      %v670 = vpop.permute.xlu0 %669
      %671 = vrot.lane.b32.xlu0 %v664, 112
      %v672 = vpop.permute.xlu0 %671
      %673 = vrot.lane.b32.xlu0 %v665, 112
      %v674 = vpop.permute.xlu0 %673
      %v675 = vsel %vm641, %v670, %v672
      %v676 = vsel %vm641, %v672, %v674
      %v679 = vadd.f32 %v646, %v675
      %v680 = vadd.f32 %v647, %v676
      %s681 = scalar_lea.vmem %s1, 112
      %v682 = vld [vmem:[%s681] sm:$0xff]
      %v683 = vmul.f32 %v397, %v614
      %685 = vset.pattern.permute.xlu0 0
      %686 = vperm.xlu0 %685, %v682
      %v687 = vpop.permute.xlu0 %686
      %v690 = vperm.slane %v683, 0
      %v691 = vperm.slane %v683, 1
      %v692 = vperm.slane %v683, 2
      %v696 = vmul.f32 %v687, %v690
      %v697 = vmul.f32 %v687, %v691
      %v698 = vmul.f32 %v687, %v692
      %702 = vrot.lane.b32.xlu0 %v696, 112
      %v703 = vpop.permute.xlu0 %702
      %704 = vrot.lane.b32.xlu0 %v697, 112
      %v705 = vpop.permute.xlu0 %704
      %706 = vrot.lane.b32.xlu0 %v698, 112
      %v707 = vpop.permute.xlu0 %706
      %v708 = vsel %vm641, %v703, %v705
      %v709 = vsel %vm641, %v705, %v707
      %v712 = vadd.f32 %v679, %v708
      %v713 = vadd.f32 %v680, %v709
      %s714 = scalar_lea.vmem %s1, 120
      %v715 = vld [vmem:[%s714] sm:$0xff]
      %v716 = vmul.f32 %v431, %v614
      %718 = vset.pattern.permute.xlu0 0
      %719 = vperm.xlu0 %718, %v715
      %v720 = vpop.permute.xlu0 %719
      %v723 = vperm.slane %v716, 0
      %v724 = vperm.slane %v716, 1
      %v725 = vperm.slane %v716, 2
      %v729 = vmul.f32 %v720, %v723
      %v730 = vmul.f32 %v720, %v724
      %v731 = vmul.f32 %v720, %v725
      %735 = vrot.lane.b32.xlu0 %v729, 112
      %v736 = vpop.permute.xlu0 %735
      %737 = vrot.lane.b32.xlu0 %v730, 112
      %v738 = vpop.permute.xlu0 %737
      %739 = vrot.lane.b32.xlu0 %v731, 112
      %v740 = vpop.permute.xlu0 %739
      %v741 = vsel %vm641, %v736, %v738
      %v742 = vsel %vm641, %v738, %v740
      %v745 = vadd.f32 %v712, %v741
      %v746 = vadd.f32 %v713, %v742
      %s747 = scalar_lea.vmem %s1, 128
      %v748 = vld [vmem:[%s747] sm:$0xff]
      %749 = vrot.lane.b32.xlu0 %v320, 17
      %v750 = vpop.permute.xlu0 %749
      %v751 = vrot.slane %v750, 7
      %vm752 = vcmask 138240
      %v753 = vsel %vm752, %v751, %v750
      %v755 = vmul.f32 %v321, %v753
      %757 = vset.pattern.permute.xlu0 0
      %758 = vperm.xlu0 %757, %v748
      %v759 = vpop.permute.xlu0 %758
      %v762 = vperm.slane %v755, 0
      %v763 = vperm.slane %v755, 1
      %v764 = vperm.slane %v755, 2
      %v768 = vmul.f32 %v759, %v762
      %v769 = vmul.f32 %v759, %v763
      %v770 = vmul.f32 %v759, %v764
      %774 = vrot.lane.b32.xlu0 %v768, 111
      %v775 = vpop.permute.xlu0 %774
      %776 = vrot.lane.b32.xlu0 %v769, 111
      %v777 = vpop.permute.xlu0 %776
      %778 = vrot.lane.b32.xlu0 %v770, 111
      %v779 = vpop.permute.xlu0 %778
      %vm780 = vcmask 908288
      %v781 = vsel %vm780, %v775, %v777
      %v782 = vsel %vm780, %v777, %v779
      %v785 = vadd.f32 %v745, %v781
      %v786 = vadd.f32 %v746, %v782
      %s787 = scalar_lea.vmem %s1, 136
      %v788 = vld [vmem:[%s787] sm:$0xff]
      %v789 = vmul.f32 %v363, %v753
      %791 = vset.pattern.permute.xlu0 0
      %792 = vperm.xlu0 %791, %v788
      %v793 = vpop.permute.xlu0 %792
      %v796 = vperm.slane %v789, 0
      %v797 = vperm.slane %v789, 1
      %v798 = vperm.slane %v789, 2
      %v802 = vmul.f32 %v793, %v796
      %v803 = vmul.f32 %v793, %v797
      %v804 = vmul.f32 %v793, %v798
      %808 = vrot.lane.b32.xlu0 %v802, 111
      %v809 = vpop.permute.xlu0 %808
      %810 = vrot.lane.b32.xlu0 %v803, 111
      %v811 = vpop.permute.xlu0 %810
      %812 = vrot.lane.b32.xlu0 %v804, 111
      %v813 = vpop.permute.xlu0 %812
      %v814 = vsel %vm780, %v809, %v811
      %v815 = vsel %vm780, %v811, %v813
      %v818 = vadd.f32 %v785, %v814
      %v819 = vadd.f32 %v786, %v815
      %s820 = scalar_lea.vmem %s1, 144
      %v821 = vld [vmem:[%s820] sm:$0xff]
      %v822 = vmul.f32 %v397, %v753
      %824 = vset.pattern.permute.xlu0 0
      %825 = vperm.xlu0 %824, %v821
      %v826 = vpop.permute.xlu0 %825
      %v829 = vperm.slane %v822, 0
      %v830 = vperm.slane %v822, 1
      %v831 = vperm.slane %v822, 2
      %v835 = vmul.f32 %v826, %v829
      %v836 = vmul.f32 %v826, %v830
      %v837 = vmul.f32 %v826, %v831
      %841 = vrot.lane.b32.xlu0 %v835, 111
      %v842 = vpop.permute.xlu0 %841
      %843 = vrot.lane.b32.xlu0 %v836, 111
      %v844 = vpop.permute.xlu0 %843
      %845 = vrot.lane.b32.xlu0 %v837, 111
      %v846 = vpop.permute.xlu0 %845
      %v847 = vsel %vm780, %v842, %v844
      %v848 = vsel %vm780, %v844, %v846
      %v851 = vadd.f32 %v818, %v847
      %v852 = vadd.f32 %v819, %v848
      %s853 = scalar_lea.vmem %s1, 152
      %v854 = vld [vmem:[%s853] sm:$0xff]
      %v855 = vmul.f32 %v431, %v753
      %857 = vset.pattern.permute.xlu0 0
      %858 = vperm.xlu0 %857, %v854
      %v859 = vpop.permute.xlu0 %858
      %v862 = vperm.slane %v855, 0
      %v863 = vperm.slane %v855, 1
      %v864 = vperm.slane %v855, 2
      %v868 = vmul.f32 %v859, %v862
      %v869 = vmul.f32 %v859, %v863
      %v870 = vmul.f32 %v859, %v864
      %874 = vrot.lane.b32.xlu0 %v868, 111
      %v875 = vpop.permute.xlu0 %874
      %876 = vrot.lane.b32.xlu0 %v869, 111
      %v877 = vpop.permute.xlu0 %876
      %878 = vrot.lane.b32.xlu0 %v870, 111
      %v879 = vpop.permute.xlu0 %878
      %v880 = vsel %vm780, %v875, %v877
      %v881 = vsel %vm780, %v877, %v879
      %v884 = vadd.f32 %v851, %v880
      %v885 = vadd.f32 %v852, %v881
      %s886 = scalar_lea.vmem %s1, 160
      %v887 = vld [vmem:[%s886] sm:$0xff]
      %888 = vrot.lane.b32.xlu0 %v466, 18
      %v889 = vpop.permute.xlu0 %888
      %v890 = vrot.slane %v889, 7
      %vm891 = vcmask 146432
      %v892 = vsel %vm891, %v890, %v889
      %v894 = vmul.f32 %v321, %v892
      %896 = vset.pattern.permute.xlu0 0
      %897 = vperm.xlu0 %896, %v887
      %v898 = vpop.permute.xlu0 %897
      %v901 = vperm.slane %v894, 0
      %v902 = vperm.slane %v894, 1
      %v903 = vperm.slane %v894, 2
      %v907 = vmul.f32 %v898, %v901
      %v908 = vmul.f32 %v898, %v902
      %v909 = vmul.f32 %v898, %v903
      %913 = vrot.lane.b32.xlu0 %v907, 110
      %v914 = vpop.permute.xlu0 %913
      %915 = vrot.lane.b32.xlu0 %v908, 110
      %v916 = vpop.permute.xlu0 %915
      %917 = vrot.lane.b32.xlu0 %v909, 110
      %v918 = vpop.permute.xlu0 %917
      %vm919 = vcmask 900096
      %v920 = vsel %vm919, %v914, %v916
      %v921 = vsel %vm919, %v916, %v918
      %v924 = vadd.f32 %v884, %v920
      %v925 = vadd.f32 %v885, %v921
      %s926 = scalar_lea.vmem %s1, 168
      %v927 = vld [vmem:[%s926] sm:$0xff]
      %v928 = vmul.f32 %v363, %v892
      %930 = vset.pattern.permute.xlu0 0
      %931 = vperm.xlu0 %930, %v927
      %v932 = vpop.permute.xlu0 %931
      %v935 = vperm.slane %v928, 0
      %v936 = vperm.slane %v928, 1
      %v937 = vperm.slane %v928, 2
      %v941 = vmul.f32 %v932, %v935
      %v942 = vmul.f32 %v932, %v936
      %v943 = vmul.f32 %v932, %v937
      %947 = vrot.lane.b32.xlu0 %v941, 110
      %v948 = vpop.permute.xlu0 %947
      %949 = vrot.lane.b32.xlu0 %v942, 110
      %v950 = vpop.permute.xlu0 %949
      %951 = vrot.lane.b32.xlu0 %v943, 110
      %v952 = vpop.permute.xlu0 %951
      %v953 = vsel %vm919, %v948, %v950
      %v954 = vsel %vm919, %v950, %v952
      %v957 = vadd.f32 %v924, %v953
      %v958 = vadd.f32 %v925, %v954
      %s959 = scalar_lea.vmem %s1, 176
      %v960 = vld [vmem:[%s959] sm:$0xff]
      %v961 = vmul.f32 %v397, %v892
      %963 = vset.pattern.permute.xlu0 0
      %964 = vperm.xlu0 %963, %v960
      %v965 = vpop.permute.xlu0 %964
      %v968 = vperm.slane %v961, 0
      %v969 = vperm.slane %v961, 1
      %v970 = vperm.slane %v961, 2
      %v974 = vmul.f32 %v965, %v968
      %v975 = vmul.f32 %v965, %v969
      %v976 = vmul.f32 %v965, %v970
      %980 = vrot.lane.b32.xlu0 %v974, 110
      %v981 = vpop.permute.xlu0 %980
      %982 = vrot.lane.b32.xlu0 %v975, 110
      %v983 = vpop.permute.xlu0 %982
      %984 = vrot.lane.b32.xlu0 %v976, 110
      %v985 = vpop.permute.xlu0 %984
      %v986 = vsel %vm919, %v981, %v983
      %v987 = vsel %vm919, %v983, %v985
      %v990 = vadd.f32 %v957, %v986
      %v991 = vadd.f32 %v958, %v987
      %s992 = scalar_lea.vmem %s1, 184
      %v993 = vld [vmem:[%s992] sm:$0xff]
      %v994 = vmul.f32 %v431, %v892
      %996 = vset.pattern.permute.xlu0 0
      %997 = vperm.xlu0 %996, %v993
      %v998 = vpop.permute.xlu0 %997
      %v1001 = vperm.slane %v994, 0
      %v1002 = vperm.slane %v994, 1
      %v1003 = vperm.slane %v994, 2
      %v1007 = vmul.f32 %v998, %v1001
      %v1008 = vmul.f32 %v998, %v1002
      %v1009 = vmul.f32 %v998, %v1003
      %1013 = vrot.lane.b32.xlu0 %v1007, 110
      %v1014 = vpop.permute.xlu0 %1013
      %1015 = vrot.lane.b32.xlu0 %v1008, 110
      %v1016 = vpop.permute.xlu0 %1015
      %1017 = vrot.lane.b32.xlu0 %v1009, 110
      %v1018 = vpop.permute.xlu0 %1017
      %v1019 = vsel %vm919, %v1014, %v1016
      %v1020 = vsel %vm919, %v1016, %v1018
      %v1023 = vadd.f32 %v990, %v1019
      %v1024 = vadd.f32 %v991, %v1020
      %s1025 = scalar_lea.vmem %s1, 192
      %v1026 = vld [vmem:[%s1025] sm:$0xff]
      %1027 = vrot.lane.b32.xlu0 %v244, 32
      %v1028 = vpop.permute.xlu0 %1027
      %v1029 = vrot.slane %v1028, 7
      %vm1030 = vcmask 261120
      %v1031 = vsel %vm1030, %v1029, %v1028
      %v1033 = vmul.f32 %v321, %v1031
      %1035 = vset.pattern.permute.xlu0 0
      %1036 = vperm.xlu0 %1035, %v1026
      %v1037 = vpop.permute.xlu0 %1036
      %v1040 = vperm.slane %v1033, 0
      %v1041 = vperm.slane %v1033, 1
      %v1042 = vperm.slane %v1033, 2
      %v1046 = vmul.f32 %v1037, %v1040
      %v1047 = vmul.f32 %v1037, %v1041
      %v1048 = vmul.f32 %v1037, %v1042
      %1052 = vrot.lane.b32.xlu0 %v1046, 96
      %v1053 = vpop.permute.xlu0 %1052
      %1054 = vrot.lane.b32.xlu0 %v1047, 96
      %v1055 = vpop.permute.xlu0 %1054
      %1056 = vrot.lane.b32.xlu0 %v1048, 96
      %v1057 = vpop.permute.xlu0 %1056
      %vm1058 = vcmask 785408
      %v1059 = vsel %vm1058, %v1053, %v1055
      %v1060 = vsel %vm1058, %v1055, %v1057
      %v1063 = vadd.f32 %v1023, %v1059
      %v1064 = vadd.f32 %v1024, %v1060
      %s1065 = scalar_lea.vmem %s1, 200
      %v1066 = vld [vmem:[%s1065] sm:$0xff]
      %v1067 = vmul.f32 %v363, %v1031
      %1069 = vset.pattern.permute.xlu0 0
      %1070 = vperm.xlu0 %1069, %v1066
      %v1071 = vpop.permute.xlu0 %1070
      %v1074 = vperm.slane %v1067, 0
      %v1075 = vperm.slane %v1067, 1
      %v1076 = vperm.slane %v1067, 2
      %v1080 = vmul.f32 %v1071, %v1074
      %v1081 = vmul.f32 %v1071, %v1075
      %v1082 = vmul.f32 %v1071, %v1076
      %1086 = vrot.lane.b32.xlu0 %v1080, 96
      %v1087 = vpop.permute.xlu0 %1086
      %1088 = vrot.lane.b32.xlu0 %v1081, 96
      %v1089 = vpop.permute.xlu0 %1088
      %1090 = vrot.lane.b32.xlu0 %v1082, 96
      %v1091 = vpop.permute.xlu0 %1090
      %v1092 = vsel %vm1058, %v1087, %v1089
      %v1093 = vsel %vm1058, %v1089, %v1091
      %v1096 = vadd.f32 %v1063, %v1092
      %v1097 = vadd.f32 %v1064, %v1093
      %s1098 = scalar_lea.vmem %s1, 208
      %v1099 = vld [vmem:[%s1098] sm:$0xff]
      %v1100 = vmul.f32 %v397, %v1031
      %1102 = vset.pattern.permute.xlu0 0
      %1103 = vperm.xlu0 %1102, %v1099
      %v1104 = vpop.permute.xlu0 %1103
      %v1107 = vperm.slane %v1100, 0
      %v1108 = vperm.slane %v1100, 1
      %v1109 = vperm.slane %v1100, 2
      %v1113 = vmul.f32 %v1104, %v1107
      %v1114 = vmul.f32 %v1104, %v1108
      %v1115 = vmul.f32 %v1104, %v1109
      %1119 = vrot.lane.b32.xlu0 %v1113, 96
      %v1120 = vpop.permute.xlu0 %1119
      %1121 = vrot.lane.b32.xlu0 %v1114, 96
      %v1122 = vpop.permute.xlu0 %1121
      %1123 = vrot.lane.b32.xlu0 %v1115, 96
      %v1124 = vpop.permute.xlu0 %1123
      %v1125 = vsel %vm1058, %v1120, %v1122
      %v1126 = vsel %vm1058, %v1122, %v1124
      %v1129 = vadd.f32 %v1096, %v1125
      %v1130 = vadd.f32 %v1097, %v1126
      %s1131 = scalar_lea.vmem %s1, 216
      %v1132 = vld [vmem:[%s1131] sm:$0xff]
      %v1133 = vmul.f32 %v431, %v1031
      %1135 = vset.pattern.permute.xlu0 0
      %1136 = vperm.xlu0 %1135, %v1132
      %v1137 = vpop.permute.xlu0 %1136
      %v1140 = vperm.slane %v1133, 0
      %v1141 = vperm.slane %v1133, 1
      %v1142 = vperm.slane %v1133, 2
      %v1146 = vmul.f32 %v1137, %v1140
      %v1147 = vmul.f32 %v1137, %v1141
      %v1148 = vmul.f32 %v1137, %v1142
      %1152 = vrot.lane.b32.xlu0 %v1146, 96
      %v1153 = vpop.permute.xlu0 %1152
      %1154 = vrot.lane.b32.xlu0 %v1147, 96
      %v1155 = vpop.permute.xlu0 %1154
      %1156 = vrot.lane.b32.xlu0 %v1148, 96
      %v1157 = vpop.permute.xlu0 %1156
      %v1158 = vsel %vm1058, %v1153, %v1155
      %v1159 = vsel %vm1058, %v1155, %v1157
      %v1162 = vadd.f32 %v1129, %v1158
      %v1163 = vadd.f32 %v1130, %v1159
      %s1164 = scalar_lea.vmem %s1, 224
      %v1165 = vld [vmem:[%s1164] sm:$0xff]
      %1166 = vrot.lane.b32.xlu0 %v320, 33
      %v1167 = vpop.permute.xlu0 %1166
      %v1168 = vrot.slane %v1167, 7
      %vm1169 = vcmask 269312
      %v1170 = vsel %vm1169, %v1168, %v1167
      %v1172 = vmul.f32 %v321, %v1170
      %1174 = vset.pattern.permute.xlu0 0
      %1175 = vperm.xlu0 %1174, %v1165
      %v1176 = vpop.permute.xlu0 %1175
      %v1179 = vperm.slane %v1172, 0
      %v1180 = vperm.slane %v1172, 1
      %v1181 = vperm.slane %v1172, 2
      %v1185 = vmul.f32 %v1176, %v1179
      %v1186 = vmul.f32 %v1176, %v1180
      %v1187 = vmul.f32 %v1176, %v1181
      %1191 = vrot.lane.b32.xlu0 %v1185, 95
      %v1192 = vpop.permute.xlu0 %1191
      %1193 = vrot.lane.b32.xlu0 %v1186, 95
      %v1194 = vpop.permute.xlu0 %1193
      %1195 = vrot.lane.b32.xlu0 %v1187, 95
      %v1196 = vpop.permute.xlu0 %1195
      %vm1197 = vcmask 777216
      %v1198 = vsel %vm1197, %v1192, %v1194
      %v1199 = vsel %vm1197, %v1194, %v1196
      %v1202 = vadd.f32 %v1162, %v1198
      %v1203 = vadd.f32 %v1163, %v1199
      %s1204 = scalar_lea.vmem %s1, 232
      %v1205 = vld [vmem:[%s1204] sm:$0xff]
      %v1206 = vmul.f32 %v363, %v1170
      %1208 = vset.pattern.permute.xlu0 0
      %1209 = vperm.xlu0 %1208, %v1205
      %v1210 = vpop.permute.xlu0 %1209
      %v1213 = vperm.slane %v1206, 0
      %v1214 = vperm.slane %v1206, 1
      %v1215 = vperm.slane %v1206, 2
      %v1219 = vmul.f32 %v1210, %v1213
      %v1220 = vmul.f32 %v1210, %v1214
      %v1221 = vmul.f32 %v1210, %v1215
      %1225 = vrot.lane.b32.xlu0 %v1219, 95
      %v1226 = vpop.permute.xlu0 %1225
      %1227 = vrot.lane.b32.xlu0 %v1220, 95
      %v1228 = vpop.permute.xlu0 %1227
      %1229 = vrot.lane.b32.xlu0 %v1221, 95
      %v1230 = vpop.permute.xlu0 %1229
      %v1231 = vsel %vm1197, %v1226, %v1228
      %v1232 = vsel %vm1197, %v1228, %v1230
      %v1235 = vadd.f32 %v1202, %v1231
      %v1236 = vadd.f32 %v1203, %v1232
      %s1237 = scalar_lea.vmem %s1, 240
      %v1238 = vld [vmem:[%s1237] sm:$0xff]
      %v1239 = vmul.f32 %v397, %v1170
      %1241 = vset.pattern.permute.xlu0 0
      %1242 = vperm.xlu0 %1241, %v1238
      %v1243 = vpop.permute.xlu0 %1242
      %v1246 = vperm.slane %v1239, 0
      %v1247 = vperm.slane %v1239, 1
      %v1248 = vperm.slane %v1239, 2
      %v1252 = vmul.f32 %v1243, %v1246
      %v1253 = vmul.f32 %v1243, %v1247
      %v1254 = vmul.f32 %v1243, %v1248
      %1258 = vrot.lane.b32.xlu0 %v1252, 95
      %v1259 = vpop.permute.xlu0 %1258
      %1260 = vrot.lane.b32.xlu0 %v1253, 95
      %v1261 = vpop.permute.xlu0 %1260
      %1262 = vrot.lane.b32.xlu0 %v1254, 95
      %v1263 = vpop.permute.xlu0 %1262
      %v1264 = vsel %vm1197, %v1259, %v1261
      %v1265 = vsel %vm1197, %v1261, %v1263
      %v1268 = vadd.f32 %v1235, %v1264
      %v1269 = vadd.f32 %v1236, %v1265
      %s1270 = scalar_lea.vmem %s1, 248
      %v1271 = vld [vmem:[%s1270] sm:$0xff]
      %v1272 = vmul.f32 %v431, %v1170
      %1274 = vset.pattern.permute.xlu0 0
      %1275 = vperm.xlu0 %1274, %v1271
      %v1276 = vpop.permute.xlu0 %1275
      %v1279 = vperm.slane %v1272, 0
      %v1280 = vperm.slane %v1272, 1
      %v1281 = vperm.slane %v1272, 2
      %v1285 = vmul.f32 %v1276, %v1279
      %v1286 = vmul.f32 %v1276, %v1280
      %v1287 = vmul.f32 %v1276, %v1281
      %1291 = vrot.lane.b32.xlu0 %v1285, 95
      %v1292 = vpop.permute.xlu0 %1291
      %1293 = vrot.lane.b32.xlu0 %v1286, 95
      %v1294 = vpop.permute.xlu0 %1293
      %1295 = vrot.lane.b32.xlu0 %v1287, 95
      %v1296 = vpop.permute.xlu0 %1295
      %v1297 = vsel %vm1197, %v1292, %v1294
      %v1298 = vsel %vm1197, %v1294, %v1296
      %v1301 = vadd.f32 %v1268, %v1297
      %v1302 = vadd.f32 %v1269, %v1298
      %s1303 = scalar_lea.vmem %s1, 256
      %v1304 = vld [vmem:[%s1303] sm:$0xff]
      %1305 = vrot.lane.b32.xlu0 %v466, 34
      %v1306 = vpop.permute.xlu0 %1305
      %v1307 = vrot.slane %v1306, 7
      %vm1308 = vcmask 277504
      %v1309 = vsel %vm1308, %v1307, %v1306
      %v1311 = vmul.f32 %v321, %v1309
      %1313 = vset.pattern.permute.xlu0 0
      %1314 = vperm.xlu0 %1313, %v1304
      %v1315 = vpop.permute.xlu0 %1314
      %v1318 = vperm.slane %v1311, 0
      %v1319 = vperm.slane %v1311, 1
      %v1320 = vperm.slane %v1311, 2
      %v1324 = vmul.f32 %v1315, %v1318
      %v1325 = vmul.f32 %v1315, %v1319
      %v1326 = vmul.f32 %v1315, %v1320
      %1330 = vrot.lane.b32.xlu0 %v1324, 94
      %v1331 = vpop.permute.xlu0 %1330
      %1332 = vrot.lane.b32.xlu0 %v1325, 94
      %v1333 = vpop.permute.xlu0 %1332
      %1334 = vrot.lane.b32.xlu0 %v1326, 94
      %v1335 = vpop.permute.xlu0 %1334
      %vm1336 = vcmask 769024
      %v1337 = vsel %vm1336, %v1331, %v1333
      %v1338 = vsel %vm1336, %v1333, %v1335
      %v1341 = vadd.f32 %v1301, %v1337
      %v1342 = vadd.f32 %v1302, %v1338
      %s1343 = scalar_lea.vmem %s1, 264
      %v1344 = vld [vmem:[%s1343] sm:$0xff]
      %v1345 = vmul.f32 %v363, %v1309
      %1347 = vset.pattern.permute.xlu0 0
      %1348 = vperm.xlu0 %1347, %v1344
      %v1349 = vpop.permute.xlu0 %1348
      %v1352 = vperm.slane %v1345, 0
      %v1353 = vperm.slane %v1345, 1
      %v1354 = vperm.slane %v1345, 2
      %v1358 = vmul.f32 %v1349, %v1352
      %v1359 = vmul.f32 %v1349, %v1353
      %v1360 = vmul.f32 %v1349, %v1354
      %1364 = vrot.lane.b32.xlu0 %v1358, 94
      %v1365 = vpop.permute.xlu0 %1364
      %1366 = vrot.lane.b32.xlu0 %v1359, 94
      %v1367 = vpop.permute.xlu0 %1366
      %1368 = vrot.lane.b32.xlu0 %v1360, 94
      %v1369 = vpop.permute.xlu0 %1368
      %v1370 = vsel %vm1336, %v1365, %v1367
      %v1371 = vsel %vm1336, %v1367, %v1369
      %v1374 = vadd.f32 %v1341, %v1370
      %v1375 = vadd.f32 %v1342, %v1371
      %s1376 = scalar_lea.vmem %s1, 272
      %v1377 = vld [vmem:[%s1376] sm:$0xff]
      %v1378 = vmul.f32 %v397, %v1309
      %1380 = vset.pattern.permute.xlu0 0
      %1381 = vperm.xlu0 %1380, %v1377
      %v1382 = vpop.permute.xlu0 %1381
      %v1385 = vperm.slane %v1378, 0
      %v1386 = vperm.slane %v1378, 1
      %v1387 = vperm.slane %v1378, 2
      %v1391 = vmul.f32 %v1382, %v1385
      %v1392 = vmul.f32 %v1382, %v1386
      %v1393 = vmul.f32 %v1382, %v1387
      %1397 = vrot.lane.b32.xlu0 %v1391, 94
      %v1398 = vpop.permute.xlu0 %1397
      %1399 = vrot.lane.b32.xlu0 %v1392, 94
      %v1400 = vpop.permute.xlu0 %1399
      %1401 = vrot.lane.b32.xlu0 %v1393, 94
      %v1402 = vpop.permute.xlu0 %1401
      %v1403 = vsel %vm1336, %v1398, %v1400
      %v1404 = vsel %vm1336, %v1400, %v1402
      %v1407 = vadd.f32 %v1374, %v1403
      %v1408 = vadd.f32 %v1375, %v1404
      %s1409 = scalar_lea.vmem %s1, 280
      %v1410 = vld [vmem:[%s1409] sm:$0xff]
      %v1411 = vmul.f32 %v431, %v1309
      %1413 = vset.pattern.permute.xlu0 0
      %1414 = vperm.xlu0 %1413, %v1410
      %v1415 = vpop.permute.xlu0 %1414
      %v1418 = vperm.slane %v1411, 0
      %v1419 = vperm.slane %v1411, 1
      %v1420 = vperm.slane %v1411, 2
      %v1424 = vmul.f32 %v1415, %v1418
      %v1425 = vmul.f32 %v1415, %v1419
      %v1426 = vmul.f32 %v1415, %v1420
      %1430 = vrot.lane.b32.xlu0 %v1424, 94
      %v1431 = vpop.permute.xlu0 %1430
      %1432 = vrot.lane.b32.xlu0 %v1425, 94
      %v1433 = vpop.permute.xlu0 %1432
      %1434 = vrot.lane.b32.xlu0 %v1426, 94
      %v1435 = vpop.permute.xlu0 %1434
      %v1436 = vsel %vm1336, %v1431, %v1433
      %v1437 = vsel %vm1336, %v1433, %v1435
      %v1440 = vadd.f32 %v1407, %v1436
      %v1441 = vadd.f32 %v1408, %v1437
      %v1442 = vld [vmem:[%s2] sm:$0xff]
      %1444 = vset.pattern.permute.xlu0 0
      %1445 = vperm.xlu0 %1444, %v1442
      %v1446 = vpop.permute.xlu0 %1445
      %v1448 = vadd.f32 %v1440, %v1446
      %v1449 = vadd.f32 %v1441, %v1446
      %s1450 = smul.u32 %s17, 2
      %s1451 = smul.addr %s1450, 8
      %s1452 = scalar_lea.vmem %s6, %s1451
      %1453 = vst [vmem:[%s1452] sm:$0xff] %v1448
      %1454 = vst [vmem:[%s1452 + $0x8] sm:$0xff] %v1449
      %v1455 = vld [vmem:[#allocation2] sm:$0xff]
      %v1456 = vadd.f32 %v1448, %v1449
      %1457 = vadd.xlane.f32.xlu0 %v1456
      %v1458 = vpop.xlane.xlu0 %1457
      %v1459 = vadd.f32 %v1455, %v1458
      %1460 = vst.msk [vmem:[#allocation2] sm:$0xff] %vm328, %v1459
      %v1461 = vld [vmem:[#allocation3] sm:$0xff]
      %v1462 = vmul.f32 %v1448, %v1448
      %v1463 = vmul.f32 %v1449, %v1449
      %v1464 = vadd.f32 %v1462, %v1463
      %1465 = vadd.xlane.f32.xlu0 %v1464
      %v1466 = vpop.xlane.xlu0 %1465
      %v1467 = vadd.f32 %v1461, %v1466
      %1468 = vst.msk [vmem:[#allocation3] sm:$0xff] %vm328, %v1467
      %p1469 = scmp.eq.s32.totalorder %s17, 1
      // Predicated region
      $region49: #{conv_bn_relu.1} parent=43 // pred_check
        %p1470 = pneg %p1469
      $region50: #{conv_bn_relu.1} parent=43 // pred_check_branch
        %1472 = sbr.rel (%p1470) target = $region52
      $region51: #{conv_bn_relu.1} parent=43 // pred_region
        %v1473 = vld [vmem:[#allocation2] sm:$0xff]
        %v1474 = vmul.f32 %v1473, 0.001953125
        %v1475 = vld [vmem:[#allocation3] sm:$0xff]
        %v1476 = vmul.f32 %v1475, 0.001953125
        %v1477 = vmul.f32 %v1474, %v1474
        %v1478 = vsub.f32 %v1476, %v1477
        %v1479 = vmax.f32 %v1478, 0.0
        %v1480 = vadd.f32 %v1479, 1e-05
        %v1481 = vrsqrt.pop %v1480
        %v1482 = vmul.f32 %v1481, %v1480
        %v1483 = vmul.f32 %v1482, %v1481
        %v1484 = vmul.f32 0.5, %v1483
        %v1485 = vsub.f32 1.5, %v1484
        %v1486 = vmul.f32 %v1481, %v1485
        %vm1487 = vweird.f32 %v1480
        %vm1488 = vweird.f32 %v1481
        %vm1489 = vmor %vm1487, %vm1488
        %v1490 = vsel %vm1489, %v1481, %v1486
        %v1491 = vld [vmem:[%s3] sm:$0xff]
        %v1492 = vmul.f32 %v1491, %v1490
        %v1493 = vld [vmem:[%s4] sm:$0xff]
        %v1494 = vmul.f32 %v1474, %v1492
        %v1495 = vsub.f32 %v1493, %v1494
        %v1496 = vld [vmem:[%s6] sm:$0xff]
        %v1497 = vld [vmem:[%s6 + $0x8] sm:$0xff]
        %v1498 = vld [vmem:[%s6 + $0x10] sm:$0xff]
        %v1499 = vld [vmem:[%s6 + $0x18] sm:$0xff]
        %1501 = vset.pattern.permute.xlu0 0
        %1502 = vperm.xlu0 %1501, %v1492
        %v1503 = vpop.permute.xlu0 %1502
        %v1505 = vmul.f32 %v1496, %v1503
        %v1506 = vmul.f32 %v1497, %v1503
        %v1507 = vmul.f32 %v1498, %v1503
        %v1508 = vmul.f32 %v1499, %v1503
        %1510 = vset.pattern.permute.xlu0 0
        %1511 = vperm.xlu0 %1510, %v1495
        %v1512 = vpop.permute.xlu0 %1511
        %v1514 = vadd.f32 %v1505, %v1512
        %v1515 = vadd.f32 %v1506, %v1512
        %v1516 = vadd.f32 %v1507, %v1512
        %v1517 = vadd.f32 %v1508, %v1512
        %v1518 = vmax.f32 %v1514, 0.0
        %v1519 = vmax.f32 %v1515, 0.0
        %v1520 = vmax.f32 %v1516, 0.0
        %v1521 = vmax.f32 %v1517, 0.0
        %1522 = vst [vmem:[%s6] sm:$0xff] %v1518
        %1523 = vst [vmem:[%s6 + $0x8] sm:$0xff] %v1519
        %1524 = vst [vmem:[%s6 + $0x10] sm:$0xff] %v1520
        %1525 = vst [vmem:[%s6 + $0x18] sm:$0xff] %v1521
      $region52: #{conv_bn_relu.1} parent=43 // pred_fallthru
        _
      // Predicated region
      $region53: #{conv_bn_relu.1} parent=43 // pred_check
        %p1526 = pneg %p161
      $region54: #{conv_bn_relu.1} parent=43 // pred_check_branch
        %1528 = sbr.rel (%p1526) target = $region56
      $region55: #{conv_bn_relu.1} parent=43 // pred_region
        _
      $region56: #{conv_bn_relu.1} parent=43 // pred_fallthru
        _
      // Predicated region
      $region57: #{conv_bn_relu.1} parent=43 // pred_check
        %p1529 = pneg %p161
      $region58: #{conv_bn_relu.1} parent=43 // pred_check_branch
        %1531 = sbr.rel (%p1529) target = $region60
      $region59: #{conv_bn_relu.1} parent=43 // pred_region
        _
      $region60: #{conv_bn_relu.1} parent=43 // pred_fallthru
        _
    $region44: #{conv_bn_relu.1} parent=5 // pred_fallthru
      _
    %p1532 = scmp.le.s32.totalorder 2, %s12
    // Predicated region
    $region61: #{conv_bn_relu.1} parent=5 // pred_check
      %p1533 = pneg %p1532
    $region62: #{conv_bn_relu.1} parent=5 // pred_check_branch
      %1535 = sbr.rel (%p1533) target = $region64
    $region63: #{conv_bn_relu.1} parent=5 // pred_region
      %s1536 = ssub.s32 %s12, 2
    $region64: #{conv_bn_relu.1} parent=5 // pred_fallthru
      _
  $region6: #{conv_bn_relu.1} parent=0 // loop_footer
    %s16 = sadd.s32 1, %s12
  $region7: #{conv_bn_relu.1} parent=0 // loop_footer_branch
    %11 = sbr.rel target = $region3
  $region8: #{conv_bn_relu.1} parent=0 // loop_exit
    _

</llo_original>
